<compile_context>
chip_gen: v5e
topology: v5e:2x2
jax: 0.10.0
libtpu: 0.0.40
codegen_flags: <defaults>
</compile_context>

<pallas_src>
import numpy as np
import jax
import jax.numpy as jnp
from jax.experimental import pallas as pl
from jax.experimental.pallas import tpu as pltpu  # noqa: F401  (TPU-specific tuning hooks)

# Small, module-consistent shapes (dim_k == dim_v must be divisible by num_heads=6).
B = 2            # batch
N = 8            # sequence length ("length")
DIM_IN = 32      # input feature dim ("dim_in")
D = 48           # dim_k == dim_v
NH = 6           # num_heads
DK = D // NH
DV = D // NH
FC2, FC3, FC4, FC5 = 192, 32, 8, 2   # fixed head dims from __init__
OUT_PAD = 128                        # lane-padded output width
VSLAB_W = 128                        # packed 1-row-vector slab width
EPS_LN = 1e-5
EPS_BN = 1e-5
NORM = 1.0 / float(np.sqrt(DK))      # _norm_fact = 1/sqrt(dim_k // num_heads)

# Rows of the packed vector slab.
(R_LN_IN_G, R_LN_IN_B, R_BA, R_LN_G, R_LN_B, R_WSA, R_BHEAD) = range(7)
N_VROWS = 7


# ----------------------------- shared math ----------------------------------

def _layernorm(h, g, b):
    mu = jnp.mean(h, axis=-1, keepdims=True)
    var = jnp.mean((h - mu) ** 2, axis=-1, keepdims=True)
    return (h - mu) * jax.lax.rsqrt(var + EPS_LN) * g + b


# ----------------------------- pure-JAX reference (module-faithful) ---------

def _softmax_last(s):
    s = s - jnp.max(s, axis=-1, keepdims=True)
    e = jnp.exp(s)
    return e / jnp.sum(e, axis=-1, keepdims=True)


def _mhsa_ref(h, wq, wk, wv):
    """Multi-head self-attention on one (N, D) sample (mask is a no-op)."""
    q = jnp.dot(h, wq, preferred_element_type=jnp.float32)
    k = jnp.dot(h, wk, preferred_element_type=jnp.float32)
    v = jnp.dot(h, wv, preferred_element_type=jnp.float32)
    outs = []
    for hd in range(NH):
        qh = q[:, hd * DK:(hd + 1) * DK]
        kh = k[:, hd * DK:(hd + 1) * DK]
        vh = v[:, hd * DV:(hd + 1) * DV]
        s = jnp.dot(qh, kh.T, preferred_element_type=jnp.float32) * NORM
        p = _softmax_last(s)
        outs.append(jnp.dot(p, vh, preferred_element_type=jnp.float32))
    return jnp.concatenate(outs, axis=-1)     # matches transpose(1,2).reshape order


def _forward_single_ref(x, p):
    """Full MultiHeadSelfAttentionLayers forward for one (N, DIM_IN) sample."""
    h = _layernorm(x, p["ln_in_g"], p["ln_in_b"])
    h = jnp.dot(h, p["wA"], preferred_element_type=jnp.float32) + p["bA"]

    res = h
    a = _mhsa_ref(h, p["wq2"], p["wk2"], p["wv2"])
    h = _layernorm(a + res, p["ln_g"], p["ln_b"])
    res = h
    a = _mhsa_ref(h, p["wq3"], p["wk3"], p["wv3"])
    h = _layernorm(a + res, p["ln_g"], p["ln_b"])

    # SimpleAttention: softmax over the sequence axis, weighted pooling
    sc = jnp.sum(h * p["w_sa"], axis=-1, keepdims=True)      # (N, 1)
    sc = sc - jnp.max(sc, axis=0, keepdims=True)
    e = jnp.exp(sc)
    alpha = e / jnp.sum(e, axis=0, keepdims=True)            # (N, 1)
    pooled = jnp.sum(alpha * h, axis=0, keepdims=True)       # (1, D)

    # fc1 -> bn1 -> fc2 -> bn2 -> fc3 -> bn3 -> fc4 (no activations in this forward)
    o = jnp.dot(pooled, p["w1"], preferred_element_type=jnp.float32) + p["b1"]
    o = o * p["s1"] + p["t1"]
    o = jnp.dot(o, p["w2"], preferred_element_type=jnp.float32) + p["b2"]
    o = o * p["s2"] + p["t2"]
    o = jnp.dot(o, p["w3"], preferred_element_type=jnp.float32) + p["b3"]
    o = o * p["s3"] + p["t3"]
    o = jnp.dot(o, p["w4"], preferred_element_type=jnp.float32) + p["b4"]
    return o                                                  # (1, FC5)


# --------------------------------------------------------------- Pallas kernel

def mhsal_kernel(x_ref, vs_ref, wA_ref, wqkv_ref, whead_ref, out_ref):
    x = x_ref[...]          # (B*N, DIM_IN): batch folded into the sublane axis
    vs = vs_ref[...]        # (N_VROWS, VSLAB_W): packed 1-row vectors

    ln_in_g = vs[R_LN_IN_G:R_LN_IN_G + 1, :DIM_IN]
    ln_in_b = vs[R_LN_IN_B:R_LN_IN_B + 1, :DIM_IN]
    bA = vs[R_BA:R_BA + 1, :D]
    ln_g = vs[R_LN_G:R_LN_G + 1, :D]
    ln_b = vs[R_LN_B:R_LN_B + 1, :D]
    w_sa = vs[R_WSA:R_WSA + 1, :D]
    b_head = vs[R_BHEAD:R_BHEAD + 1, :OUT_PAD]

    def attn(h2, wqkv):
        """Both batch samples, all heads; fused QKV, no explicit transposes."""
        qkv = jnp.dot(h2, wqkv, preferred_element_type=jnp.float32)   # (B*N, 3D)
        qkv3 = qkv.reshape(B, N, 3 * D)                               # one reshape per layer
        outs = []
        for hd in range(NH):                                  # static head loop
            q = qkv3[:, :, hd * DK:(hd + 1) * DK]
            k = qkv3[:, :, D + hd * DK:D + (hd + 1) * DK]
            v = qkv3[:, :, 2 * D + hd * DV:2 * D + (hd + 1) * DV]
            s = jnp.einsum('bnd,bmd->bnm', q, k,
                           preferred_element_type=jnp.float32) * NORM
            s = s - jnp.max(s, axis=-1, keepdims=True)
            e = jnp.exp(s)
            p = e * pl.reciprocal(jnp.sum(e, axis=-1, keepdims=True), approx=True)
            outs.append(jnp.einsum('bnm,bmd->bnd', p, v,
                                   preferred_element_type=jnp.float32))  # (B, N, DV)
        # Head order along the feature axis matches torch's transpose(1,2).reshape.
        return jnp.concatenate(outs, axis=-1).reshape(B * N, D)

    # layer_norm_input -> dropout(id) -> conv_A (pointwise) -> dropout(id)
    h = _layernorm(x, ln_in_g, ln_in_b)
    h = jnp.dot(h, wA_ref[...], preferred_element_type=jnp.float32) + bA   # (B*N, D)

    # MHSA2 + residual layer_norm, MHSA3 + residual layer_norm (dropouts identity)
    h = _layernorm(attn(h, wqkv_ref[0]) + h, ln_g, ln_b)
    h = _layernorm(attn(h, wqkv_ref[1]) + h, ln_g, ln_b)

    # SimpleAttention: softmax over the sequence axis (per batch), weighted pooling
    sc = jnp.sum(h * w_sa, axis=-1, keepdims=True)            # (B*N, 1)
    sc3 = sc.reshape(B, N, 1)
    sc3 = sc3 - jnp.max(sc3, axis=1, keepdims=True)
    e = jnp.exp(sc3)
    alpha = e * pl.reciprocal(jnp.sum(e, axis=1, keepdims=True), approx=True)  # (B, N, 1)
    pooled = jnp.sum(alpha * h.reshape(B, N, D), axis=1)      # (B, D)

    # Folded fc1/bn1/fc2/bn2/fc3/bn3/fc4 head: one matmul, lane-dense (B,128) store.
    out_ref[...] = (jnp.dot(pooled, whead_ref[...],
                            preferred_element_type=jnp.float32) + b_head)


# ------------------------------------------------------------ param packing

def pack_params(p):
    """One-time weight transformation: fold BN + whole affine FC head, fuse QKV,
    pack all 1-row vectors into one slab, lane-pad the head output to 128."""
    # Fold eval-mode BatchNorm scale/shift into the adjacent Linear.
    w1f = p["w1"] * p["s1"]
    b1f = p["b1"] * p["s1"] + p["t1"]
    w2f = p["w2"] * p["s2"]
    b2f = p["b2"] * p["s2"] + p["t2"]
    w3f = p["w3"] * p["s3"]
    b3f = p["b3"] * p["s3"] + p["t3"]
    # The whole FC head has no nonlinearity in this module's forward -> fold it
    # into a single affine map (D -> FC5), then lane-pad to 128 for a dense store.
    w_head = w1f @ w2f @ w3f @ p["w4"]                                    # (D, FC5)
    b_head = ((b1f @ w2f + b2f) @ w3f + b3f) @ p["w4"] + p["b4"]          # (1, FC5)
    w_head_p = jnp.zeros((D, OUT_PAD), jnp.float32).at[:, :FC5].set(w_head)

    wqkv = jnp.stack([
        jnp.concatenate([p["wq2"], p["wk2"], p["wv2"]], axis=1),
        jnp.concatenate([p["wq3"], p["wk3"], p["wv3"]], axis=1)], axis=0)  # (2, D, 3D)

    def row(v):
        v = jnp.asarray(v, jnp.float32).reshape(1, -1)
        return jnp.zeros((1, VSLAB_W), jnp.float32).at[:, :v.shape[1]].set(v)

    vslab = jnp.concatenate([
        row(p["ln_in_g"]), row(p["ln_in_b"]), row(p["bA"]),
        row(p["ln_g"]), row(p["ln_b"]), row(p["w_sa"]),
        row(b_head)], axis=0)                                 # (N_VROWS, VSLAB_W)

    return dict(vslab=vslab, wA=p["wA"], wqkv=wqkv, w_head=w_head_p)


# ------------------------------------------------------------------- wrapper

@jax.jit
def mhsal_forward(x, packed):
    x2 = x.reshape(B * N, DIM_IN)     # fold batch into sublanes
    out = pl.pallas_call(
        mhsal_kernel,
        out_shape=jax.ShapeDtypeStruct((B, OUT_PAD), jnp.float32),
        # No grid, no per-operand blocking: a single invocation with every
        # operand resident as one whole-array VMEM block (total < 100 KB).
    )(x2, packed["vslab"], packed["wA"], packed["wqkv"], packed["w_head"])
    return out[:, :FC5]


# ------------------------------------------------------------ parameter setup

def init_params(key):
    def nrm(k, shape, scale=0.1):
        return scale * jax.random.normal(k, shape, dtype=jnp.float32)

    keys = iter(jax.random.split(key, 32))
    p = {}
    p["ln_in_g"] = 1.0 + nrm(next(keys), (1, DIM_IN))     # layer_norm_input
    p["ln_in_b"] = nrm(next(keys), (1, DIM_IN))
    p["wA"] = nrm(next(keys), (DIM_IN, D))                # conv_A (k=1) weight, transposed
    p["bA"] = nrm(next(keys), (1, D))                     # conv_A bias
    for nm in ["wq2", "wk2", "wv2", "wq3", "wk3", "wv3"]:  # MHSA2 / MHSA3 (bias=False)
        p[nm] = nrm(next(keys), (D, D))
    p["ln_g"] = 1.0 + nrm(next(keys), (1, D))             # shared self.layer_norm
    p["ln_b"] = nrm(next(keys), (1, D))
    p["w_sa"] = nrm(next(keys), (1, D))                   # SimpleAttention scalar (bias=False)
    p["w1"] = nrm(next(keys), (D, FC2));   p["b1"] = nrm(next(keys), (1, FC2))
    p["w2"] = nrm(next(keys), (FC2, FC3)); p["b2"] = nrm(next(keys), (1, FC3))
    p["w3"] = nrm(next(keys), (FC3, FC4)); p["b3"] = nrm(next(keys), (1, FC4))
    p["w4"] = nrm(next(keys), (FC4, FC5)); p["b4"] = nrm(next(keys), (1, FC5))
    # BatchNorm1d (eval): y = (x - mean)/sqrt(var+eps)*gamma + beta, folded to scale/shift.
    # TODO(synk): if trained running statistics exist, fold those instead of mean=0/var=1.
    for nm, dim in [("1", FC2), ("2", FC3), ("3", FC4)]:
        gamma = 1.0 + nrm(next(keys), (1, dim))
        beta = nrm(next(keys), (1, dim))
        running_mean = jnp.zeros((1, dim), jnp.float32)
        running_var = jnp.ones((1, dim), jnp.float32)
        scale = gamma * jax.lax.rsqrt(running_var + EPS_BN)
        p["s" + nm] = scale
        p["t" + nm] = beta - running_mean * scale
    return p


# ------------------------------------------------------------------------ main

if __name__ == "__main__":
    key = jax.random.PRNGKey(0)
    kx, kp = jax.random.split(key)
    x = jax.random.normal(kx, (B, N, DIM_IN), dtype=jnp.float32)
    params = init_params(kp)
    packed = pack_params(params)

    out = mhsal_forward(x, packed)
    out = jax.block_until_ready(out)

    # Pure-JAX module-faithful reference (unfused QKV, division softmax, unfolded BN/FCs).
    ref = jax.vmap(lambda xb: _forward_single_ref(xb, params)[0])(x)
    np.testing.assert_allclose(np.asarray(out), np.asarray(ref), rtol=2e-2, atol=2e-2)

    print("KERNEL_OK")
</pallas_src>

<mosaic_0001>
module attributes {stable_mosaic.version = 11 : i64} {
  func.func @mhsal_kernel(%arg0: memref<16x32xf32, #tpu.memory_space<vmem>>, %arg1: memref<7x128xf32, #tpu.memory_space<vmem>>, %arg2: memref<32x48xf32, #tpu.memory_space<vmem>>, %arg3: memref<2x48x144xf32, #tpu.memory_space<vmem>>, %arg4: memref<48x128xf32, #tpu.memory_space<vmem>>, %arg5: memref<2x128xf32, #tpu.memory_space<vmem>>) attributes {dimension_semantics = [], scalar_prefetch = 0 : i64, scratch_operands = 0 : i64, tpu.core_type = #tpu.core_type<tc>} {
    %c0 = arith.constant 0 : index
    %c0_0 = arith.constant 0 : index
    %0 = vector.load %arg0[%c0, %c0_0] : memref<16x32xf32, #tpu.memory_space<vmem>>, vector<16x32xf32>
    %c0_1 = arith.constant 0 : index
    %c0_2 = arith.constant 0 : index
    %1 = vector.load %arg1[%c0_1, %c0_2] : memref<7x128xf32, #tpu.memory_space<vmem>>, vector<7x128xf32>
    %2 = vector.extract_strided_slice %1 {offsets = [0, 0], sizes = [1, 32], strides = [1, 1]} : vector<7x128xf32> to vector<1x32xf32>
    %3 = vector.extract_strided_slice %1 {offsets = [1, 0], sizes = [1, 32], strides = [1, 1]} : vector<7x128xf32> to vector<1x32xf32>
    %4 = vector.extract_strided_slice %1 {offsets = [2, 0], sizes = [1, 48], strides = [1, 1]} : vector<7x128xf32> to vector<1x48xf32>
    %5 = vector.extract_strided_slice %1 {offsets = [3, 0], sizes = [1, 48], strides = [1, 1]} : vector<7x128xf32> to vector<1x48xf32>
    %6 = vector.extract_strided_slice %1 {offsets = [4, 0], sizes = [1, 48], strides = [1, 1]} : vector<7x128xf32> to vector<1x48xf32>
    %7 = vector.extract_strided_slice %1 {offsets = [5, 0], sizes = [1, 48], strides = [1, 1]} : vector<7x128xf32> to vector<1x48xf32>
    %8 = vector.extract_strided_slice %1 {offsets = [6, 0], sizes = [1, 128], strides = [1, 1]} : vector<7x128xf32> to vector<1x128xf32>
    %cst = arith.constant dense<0.000000e+00> : vector<16xf32>
    %9 = vector.multi_reduction <add>, %0, %cst [1] : vector<16x32xf32> to vector<16xf32>
    %10 = vector.shape_cast %9 : vector<16xf32> to vector<16x1xf32>
    %cst_3 = arith.constant 3.200000e+01 : f32
    %11 = vector.broadcast %cst_3 : f32 to vector<16x1xf32>
    %12 = arith.divf %10, %11 : vector<16x1xf32>
    %13 = vector.broadcast %12 : vector<16x1xf32> to vector<16x32xf32>
    %14 = arith.subf %0, %13 : vector<16x32xf32>
    %15 = arith.mulf %14, %14 : vector<16x32xf32>
    %cst_4 = arith.constant dense<0.000000e+00> : vector<16xf32>
    %16 = vector.multi_reduction <add>, %15, %cst_4 [1] : vector<16x32xf32> to vector<16xf32>
    %17 = vector.shape_cast %16 : vector<16xf32> to vector<16x1xf32>
    %cst_5 = arith.constant 3.200000e+01 : f32
    %18 = vector.broadcast %cst_5 : f32 to vector<16x1xf32>
    %19 = arith.divf %17, %18 : vector<16x1xf32>
    %20 = vector.broadcast %12 : vector<16x1xf32> to vector<16x32xf32>
    %21 = arith.subf %0, %20 : vector<16x32xf32>
    %cst_6 = arith.constant 9.99999974E-6 : f32
    %22 = vector.broadcast %cst_6 : f32 to vector<16x1xf32>
    %23 = arith.addf %19, %22 : vector<16x1xf32>
    %24 = math.rsqrt %23 : vector<16x1xf32>
    %25 = vector.broadcast %24 : vector<16x1xf32> to vector<16x32xf32>
    %26 = arith.mulf %21, %25 : vector<16x32xf32>
    %27 = vector.broadcast %2 : vector<1x32xf32> to vector<16x32xf32>
    %28 = arith.mulf %26, %27 : vector<16x32xf32>
    %29 = vector.broadcast %3 : vector<1x32xf32> to vector<16x32xf32>
    %30 = arith.addf %28, %29 : vector<16x32xf32>
    %c0_7 = arith.constant 0 : index
    %c0_8 = arith.constant 0 : index
    %31 = vector.load %arg2[%c0_7, %c0_8] : memref<32x48xf32, #tpu.memory_space<vmem>>, vector<32x48xf32>
    %cst_9 = arith.constant dense<0.000000e+00> : vector<16x48xf32>
    %32 = tpu.matmul %30, %31, %cst_9 {dimension_numbers = #tpu.dot_dimension_numbers<[1], [0], [0], [1], [0, 0, 1, 1], [], []>} : vector<16x32xf32>, vector<32x48xf32>, vector<16x48xf32> -> vector<16x48xf32>
    %33 = vector.broadcast %4 : vector<1x48xf32> to vector<16x48xf32>
    %34 = arith.addf %32, %33 : vector<16x48xf32>
    %c0_10 = arith.constant 0 : index
    %c0_11 = arith.constant 0 : index
    %c0_12 = arith.constant 0 : index
    %35 = vector.load %arg3[%c0_10, %c0_11, %c0_12] : memref<2x48x144xf32, #tpu.memory_space<vmem>>, vector<1x48x144xf32>
    %36 = vector.shape_cast %35 : vector<1x48x144xf32> to vector<48x144xf32>
    %cst_13 = arith.constant dense<0.000000e+00> : vector<16x144xf32>
    %37 = tpu.matmul %34, %36, %cst_13 {dimension_numbers = #tpu.dot_dimension_numbers<[1], [0], [0], [1], [0, 0, 1, 1], [], []>} : vector<16x48xf32>, vector<48x144xf32>, vector<16x144xf32> -> vector<16x144xf32>
    %38 = vector.shape_cast %37 : vector<16x144xf32> to vector<2x8x144xf32>
    %39 = vector.extract_strided_slice %38 {offsets = [0, 0, 0], sizes = [2, 8, 8], strides = [1, 1, 1]} : vector<2x8x144xf32> to vector<2x8x8xf32>
    %40 = vector.extract_strided_slice %38 {offsets = [0, 0, 48], sizes = [2, 8, 8], strides = [1, 1, 1]} : vector<2x8x144xf32> to vector<2x8x8xf32>
    %41 = vector.extract_strided_slice %38 {offsets = [0, 0, 96], sizes = [2, 8, 8], strides = [1, 1, 1]} : vector<2x8x144xf32> to vector<2x8x8xf32>
    "tpu.trace_start"() <{level = 10 : i32, message = "bnd,bmd->bnm"}> : () -> ()
    %cst_14 = arith.constant dense<0.000000e+00> : vector<2x8x8xf32>
    %42 = tpu.matmul %39, %40, %cst_14 {dimension_numbers = #tpu.dot_dimension_numbers<[2], [2], [1], [1], [0, 0, 0, 1, 1, 1], [0], [0]>} : vector<2x8x8xf32>, vector<2x8x8xf32>, vector<2x8x8xf32> -> vector<2x8x8xf32>
    "tpu.trace_stop"() : () -> ()
    %cst_15 = arith.constant 0.353553385 : f32
    %43 = vector.broadcast %cst_15 : f32 to vector<2x8x8xf32>
    %44 = arith.mulf %42, %43 : vector<2x8x8xf32>
    %cst_16 = arith.constant dense<0xFF800000> : vector<2x8xf32>
    %45 = vector.multi_reduction <maximumf>, %44, %cst_16 [2] : vector<2x8x8xf32> to vector<2x8xf32>
    %46 = vector.shape_cast %45 : vector<2x8xf32> to vector<2x8x1xf32>
    %47 = vector.broadcast %46 : vector<2x8x1xf32> to vector<2x8x8xf32>
    %48 = arith.subf %44, %47 : vector<2x8x8xf32>
    %49 = math.exp %48 : vector<2x8x8xf32>
    %cst_17 = arith.constant dense<0.000000e+00> : vector<2x8xf32>
    %50 = vector.multi_reduction <add>, %49, %cst_17 [2] : vector<2x8x8xf32> to vector<2x8xf32>
    %51 = vector.shape_cast %50 : vector<2x8xf32> to vector<2x8x1xf32>
    %52 = tpu.reciprocal %51 {approx = true} : vector<2x8x1xf32> -> vector<2x8x1xf32>
    %53 = vector.broadcast %52 : vector<2x8x1xf32> to vector<2x8x8xf32>
    %54 = arith.mulf %49, %53 : vector<2x8x8xf32>
    "tpu.trace_start"() <{level = 10 : i32, message = "bnm,bmd->bnd"}> : () -> ()
    %cst_18 = arith.constant dense<0.000000e+00> : vector<2x8x8xf32>
    %55 = tpu.matmul %54, %41, %cst_18 {dimension_numbers = #tpu.dot_dimension_numbers<[2], [1], [1], [2], [0, 0, 0, 1, 1, 2], [0], [0]>} : vector<2x8x8xf32>, vector<2x8x8xf32>, vector<2x8x8xf32> -> vector<2x8x8xf32>
    "tpu.trace_stop"() : () -> ()
    %56 = vector.extract_strided_slice %38 {offsets = [0, 0, 8], sizes = [2, 8, 8], strides = [1, 1, 1]} : vector<2x8x144xf32> to vector<2x8x8xf32>
    %57 = vector.extract_strided_slice %38 {offsets = [0, 0, 56], sizes = [2, 8, 8], strides = [1, 1, 1]} : vector<2x8x144xf32> to vector<2x8x8xf32>
    %58 = vector.extract_strided_slice %38 {offsets = [0, 0, 104], sizes = [2, 8, 8], strides = [1, 1, 1]} : vector<2x8x144xf32> to vector<2x8x8xf32>
    "tpu.trace_start"() <{level = 10 : i32, message = "bnd,bmd->bnm"}> : () -> ()
    %cst_19 = arith.constant dense<0.000000e+00> : vector<2x8x8xf32>
    %59 = tpu.matmul %56, %57, %cst_19 {dimension_numbers = #tpu.dot_dimension_numbers<[2], [2], [1], [1], [0, 0, 0, 1, 1, 1], [0], [0]>} : vector<2x8x8xf32>, vector<2x8x8xf32>, vector<2x8x8xf32> -> vector<2x8x8xf32>
    "tpu.trace_stop"() : () -> ()
    %cst_20 = arith.constant 0.353553385 : f32
    %60 = vector.broadcast %cst_20 : f32 to vector<2x8x8xf32>
    %61 = arith.mulf %59, %60 : vector<2x8x8xf32>
    %cst_21 = arith.constant dense<0xFF800000> : vector<2x8xf32>
    %62 = vector.multi_reduction <maximumf>, %61, %cst_21 [2] : vector<2x8x8xf32> to vector<2x8xf32>
    %63 = vector.shape_cast %62 : vector<2x8xf32> to vector<2x8x1xf32>
    %64 = vector.broadcast %63 : vector<2x8x1xf32> to vector<2x8x8xf32>
    %65 = arith.subf %61, %64 : vector<2x8x8xf32>
    %66 = math.exp %65 : vector<2x8x8xf32>
    %cst_22 = arith.constant dense<0.000000e+00> : vector<2x8xf32>
    %67 = vector.multi_reduction <add>, %66, %cst_22 [2] : vector<2x8x8xf32> to vector<2x8xf32>
    %68 = vector.shape_cast %67 : vector<2x8xf32> to vector<2x8x1xf32>
    %69 = tpu.reciprocal %68 {approx = true} : vector<2x8x1xf32> -> vector<2x8x1xf32>
    %70 = vector.broadcast %69 : vector<2x8x1xf32> to vector<2x8x8xf32>
    %71 = arith.mulf %66, %70 : vector<2x8x8xf32>
    "tpu.trace_start"() <{level = 10 : i32, message = "bnm,bmd->bnd"}> : () -> ()
    %cst_23 = arith.constant dense<0.000000e+00> : vector<2x8x8xf32>
    %72 = tpu.matmul %71, %58, %cst_23 {dimension_numbers = #tpu.dot_dimension_numbers<[2], [1], [1], [2], [0, 0, 0, 1, 1, 2], [0], [0]>} : vector<2x8x8xf32>, vector<2x8x8xf32>, vector<2x8x8xf32> -> vector<2x8x8xf32>
    "tpu.trace_stop"() : () -> ()
    %73 = vector.extract_strided_slice %38 {offsets = [0, 0, 16], sizes = [2, 8, 8], strides = [1, 1, 1]} : vector<2x8x144xf32> to vector<2x8x8xf32>
    %74 = vector.extract_strided_slice %38 {offsets = [0, 0, 64], sizes = [2, 8, 8], strides = [1, 1, 1]} : vector<2x8x144xf32> to vector<2x8x8xf32>
    %75 = vector.extract_strided_slice %38 {offsets = [0, 0, 112], sizes = [2, 8, 8], strides = [1, 1, 1]} : vector<2x8x144xf32> to vector<2x8x8xf32>
    "tpu.trace_start"() <{level = 10 : i32, message = "bnd,bmd->bnm"}> : () -> ()
    %cst_24 = arith.constant dense<0.000000e+00> : vector<2x8x8xf32>
    %76 = tpu.matmul %73, %74, %cst_24 {dimension_numbers = #tpu.dot_dimension_numbers<[2], [2], [1], [1], [0, 0, 0, 1, 1, 1], [0], [0]>} : vector<2x8x8xf32>, vector<2x8x8xf32>, vector<2x8x8xf32> -> vector<2x8x8xf32>
    "tpu.trace_stop"() : () -> ()
    %cst_25 = arith.constant 0.353553385 : f32
    %77 = vector.broadcast %cst_25 : f32 to vector<2x8x8xf32>
    %78 = arith.mulf %76, %77 : vector<2x8x8xf32>
    %cst_26 = arith.constant dense<0xFF800000> : vector<2x8xf32>
    %79 = vector.multi_reduction <maximumf>, %78, %cst_26 [2] : vector<2x8x8xf32> to vector<2x8xf32>
    %80 = vector.shape_cast %79 : vector<2x8xf32> to vector<2x8x1xf32>
    %81 = vector.broadcast %80 : vector<2x8x1xf32> to vector<2x8x8xf32>
    %82 = arith.subf %78, %81 : vector<2x8x8xf32>
    %83 = math.exp %82 : vector<2x8x8xf32>
    %cst_27 = arith.constant dense<0.000000e+00> : vector<2x8xf32>
    %84 = vector.multi_reduction <add>, %83, %cst_27 [2] : vector<2x8x8xf32> to vector<2x8xf32>
    %85 = vector.shape_cast %84 : vector<2x8xf32> to vector<2x8x1xf32>
    %86 = tpu.reciprocal %85 {approx = true} : vector<2x8x1xf32> -> vector<2x8x1xf32>
    %87 = vector.broadcast %86 : vector<2x8x1xf32> to vector<2x8x8xf32>
    %88 = arith.mulf %83, %87 : vector<2x8x8xf32>
    "tpu.trace_start"() <{level = 10 : i32, message = "bnm,bmd->bnd"}> : () -> ()
    %cst_28 = arith.constant dense<0.000000e+00> : vector<2x8x8xf32>
    %89 = tpu.matmul %88, %75, %cst_28 {dimension_numbers = #tpu.dot_dimension_numbers<[2], [1], [1], [2], [0, 0, 0, 1, 1, 2], [0], [0]>} : vector<2x8x8xf32>, vector<2x8x8xf32>, vector<2x8x8xf32> -> vector<2x8x8xf32>
    "tpu.trace_stop"() : () -> ()
    %90 = vector.extract_strided_slice %38 {offsets = [0, 0, 24], sizes = [2, 8, 8], strides = [1, 1, 1]} : vector<2x8x144xf32> to vector<2x8x8xf32>
    %91 = vector.extract_strided_slice %38 {offsets = [0, 0, 72], sizes = [2, 8, 8], strides = [1, 1, 1]} : vector<2x8x144xf32> to vector<2x8x8xf32>
    %92 = vector.extract_strided_slice %38 {offsets = [0, 0, 120], sizes = [2, 8, 8], strides = [1, 1, 1]} : vector<2x8x144xf32> to vector<2x8x8xf32>
    "tpu.trace_start"() <{level = 10 : i32, message = "bnd,bmd->bnm"}> : () -> ()
    %cst_29 = arith.constant dense<0.000000e+00> : vector<2x8x8xf32>
    %93 = tpu.matmul %90, %91, %cst_29 {dimension_numbers = #tpu.dot_dimension_numbers<[2], [2], [1], [1], [0, 0, 0, 1, 1, 1], [0], [0]>} : vector<2x8x8xf32>, vector<2x8x8xf32>, vector<2x8x8xf32> -> vector<2x8x8xf32>
    "tpu.trace_stop"() : () -> ()
    %cst_30 = arith.constant 0.353553385 : f32
    %94 = vector.broadcast %cst_30 : f32 to vector<2x8x8xf32>
    %95 = arith.mulf %93, %94 : vector<2x8x8xf32>
    %cst_31 = arith.constant dense<0xFF800000> : vector<2x8xf32>
    %96 = vector.multi_reduction <maximumf>, %95, %cst_31 [2] : vector<2x8x8xf32> to vector<2x8xf32>
    %97 = vector.shape_cast %96 : vector<2x8xf32> to vector<2x8x1xf32>
    %98 = vector.broadcast %97 : vector<2x8x1xf32> to vector<2x8x8xf32>
    %99 = arith.subf %95, %98 : vector<2x8x8xf32>
    %100 = math.exp %99 : vector<2x8x8xf32>
    %cst_32 = arith.constant dense<0.000000e+00> : vector<2x8xf32>
    %101 = vector.multi_reduction <add>, %100, %cst_32 [2] : vector<2x8x8xf32> to vector<2x8xf32>
    %102 = vector.shape_cast %101 : vector<2x8xf32> to vector<2x8x1xf32>
    %103 = tpu.reciprocal %102 {approx = true} : vector<2x8x1xf32> -> vector<2x8x1xf32>
    %104 = vector.broadcast %103 : vector<2x8x1xf32> to vector<2x8x8xf32>
    %105 = arith.mulf %100, %104 : vector<2x8x8xf32>
    "tpu.trace_start"() <{level = 10 : i32, message = "bnm,bmd->bnd"}> : () -> ()
    %cst_33 = arith.constant dense<0.000000e+00> : vector<2x8x8xf32>
    %106 = tpu.matmul %105, %92, %cst_33 {dimension_numbers = #tpu.dot_dimension_numbers<[2], [1], [1], [2], [0, 0, 0, 1, 1, 2], [0], [0]>} : vector<2x8x8xf32>, vector<2x8x8xf32>, vector<2x8x8xf32> -> vector<2x8x8xf32>
    "tpu.trace_stop"() : () -> ()
    %107 = vector.extract_strided_slice %38 {offsets = [0, 0, 32], sizes = [2, 8, 8], strides = [1, 1, 1]} : vector<2x8x144xf32> to vector<2x8x8xf32>
    %108 = vector.extract_strided_slice %38 {offsets = [0, 0, 80], sizes = [2, 8, 8], strides = [1, 1, 1]} : vector<2x8x144xf32> to vector<2x8x8xf32>
    %109 = vector.extract_strided_slice %38 {offsets = [0, 0, 128], sizes = [2, 8, 8], strides = [1, 1, 1]} : vector<2x8x144xf32> to vector<2x8x8xf32>
    "tpu.trace_start"() <{level = 10 : i32, message = "bnd,bmd->bnm"}> : () -> ()
    %cst_34 = arith.constant dense<0.000000e+00> : vector<2x8x8xf32>
    %110 = tpu.matmul %107, %108, %cst_34 {dimension_numbers = #tpu.dot_dimension_numbers<[2], [2], [1], [1], [0, 0, 0, 1, 1, 1], [0], [0]>} : vector<2x8x8xf32>, vector<2x8x8xf32>, vector<2x8x8xf32> -> vector<2x8x8xf32>
    "tpu.trace_stop"() : () -> ()
    %cst_35 = arith.constant 0.353553385 : f32
    %111 = vector.broadcast %cst_35 : f32 to vector<2x8x8xf32>
    %112 = arith.mulf %110, %111 : vector<2x8x8xf32>
    %cst_36 = arith.constant dense<0xFF800000> : vector<2x8xf32>
    %113 = vector.multi_reduction <maximumf>, %112, %cst_36 [2] : vector<2x8x8xf32> to vector<2x8xf32>
    %114 = vector.shape_cast %113 : vector<2x8xf32> to vector<2x8x1xf32>
    %115 = vector.broadcast %114 : vector<2x8x1xf32> to vector<2x8x8xf32>
    %116 = arith.subf %112, %115 : vector<2x8x8xf32>
    %117 = math.exp %116 : vector<2x8x8xf32>
    %cst_37 = arith.constant dense<0.000000e+00> : vector<2x8xf32>
    %118 = vector.multi_reduction <add>, %117, %cst_37 [2] : vector<2x8x8xf32> to vector<2x8xf32>
    %119 = vector.shape_cast %118 : vector<2x8xf32> to vector<2x8x1xf32>
    %120 = tpu.reciprocal %119 {approx = true} : vector<2x8x1xf32> -> vector<2x8x1xf32>
    %121 = vector.broadcast %120 : vector<2x8x1xf32> to vector<2x8x8xf32>
    %122 = arith.mulf %117, %121 : vector<2x8x8xf32>
    "tpu.trace_start"() <{level = 10 : i32, message = "bnm,bmd->bnd"}> : () -> ()
    %cst_38 = arith.constant dense<0.000000e+00> : vector<2x8x8xf32>
    %123 = tpu.matmul %122, %109, %cst_38 {dimension_numbers = #tpu.dot_dimension_numbers<[2], [1], [1], [2], [0, 0, 0, 1, 1, 2], [0], [0]>} : vector<2x8x8xf32>, vector<2x8x8xf32>, vector<2x8x8xf32> -> vector<2x8x8xf32>
    "tpu.trace_stop"() : () -> ()
    %124 = vector.extract_strided_slice %38 {offsets = [0, 0, 40], sizes = [2, 8, 8], strides = [1, 1, 1]} : vector<2x8x144xf32> to vector<2x8x8xf32>
    %125 = vector.extract_strided_slice %38 {offsets = [0, 0, 88], sizes = [2, 8, 8], strides = [1, 1, 1]} : vector<2x8x144xf32> to vector<2x8x8xf32>
    %126 = vector.extract_strided_slice %38 {offsets = [0, 0, 136], sizes = [2, 8, 8], strides = [1, 1, 1]} : vector<2x8x144xf32> to vector<2x8x8xf32>
    "tpu.trace_start"() <{level = 10 : i32, message = "bnd,bmd->bnm"}> : () -> ()
    %cst_39 = arith.constant dense<0.000000e+00> : vector<2x8x8xf32>
    %127 = tpu.matmul %124, %125, %cst_39 {dimension_numbers = #tpu.dot_dimension_numbers<[2], [2], [1], [1], [0, 0, 0, 1, 1, 1], [0], [0]>} : vector<2x8x8xf32>, vector<2x8x8xf32>, vector<2x8x8xf32> -> vector<2x8x8xf32>
    "tpu.trace_stop"() : () -> ()
    %cst_40 = arith.constant 0.353553385 : f32
    %128 = vector.broadcast %cst_40 : f32 to vector<2x8x8xf32>
    %129 = arith.mulf %127, %128 : vector<2x8x8xf32>
    %cst_41 = arith.constant dense<0xFF800000> : vector<2x8xf32>
    %130 = vector.multi_reduction <maximumf>, %129, %cst_41 [2] : vector<2x8x8xf32> to vector<2x8xf32>
    %131 = vector.shape_cast %130 : vector<2x8xf32> to vector<2x8x1xf32>
    %132 = vector.broadcast %131 : vector<2x8x1xf32> to vector<2x8x8xf32>
    %133 = arith.subf %129, %132 : vector<2x8x8xf32>
    %134 = math.exp %133 : vector<2x8x8xf32>
    %cst_42 = arith.constant dense<0.000000e+00> : vector<2x8xf32>
    %135 = vector.multi_reduction <add>, %134, %cst_42 [2] : vector<2x8x8xf32> to vector<2x8xf32>
    %136 = vector.shape_cast %135 : vector<2x8xf32> to vector<2x8x1xf32>
    %137 = tpu.reciprocal %136 {approx = true} : vector<2x8x1xf32> -> vector<2x8x1xf32>
    %138 = vector.broadcast %137 : vector<2x8x1xf32> to vector<2x8x8xf32>
    %139 = arith.mulf %134, %138 : vector<2x8x8xf32>
    "tpu.trace_start"() <{level = 10 : i32, message = "bnm,bmd->bnd"}> : () -> ()
    %cst_43 = arith.constant dense<0.000000e+00> : vector<2x8x8xf32>
    %140 = tpu.matmul %139, %126, %cst_43 {dimension_numbers = #tpu.dot_dimension_numbers<[2], [1], [1], [2], [0, 0, 0, 1, 1, 2], [0], [0]>} : vector<2x8x8xf32>, vector<2x8x8xf32>, vector<2x8x8xf32> -> vector<2x8x8xf32>
    "tpu.trace_stop"() : () -> ()
    %141 = tpu.concatenate %55, %72, %89, %106, %123, %140 in 2 : vector<2x8x8xf32>, vector<2x8x8xf32>, vector<2x8x8xf32>, vector<2x8x8xf32>, vector<2x8x8xf32>, vector<2x8x8xf32> -> vector<2x8x48xf32>
    %142 = vector.shape_cast %141 : vector<2x8x48xf32> to vector<16x48xf32>
    %143 = arith.addf %142, %34 : vector<16x48xf32>
    %cst_44 = arith.constant dense<0.000000e+00> : vector<16xf32>
    %144 = vector.multi_reduction <add>, %143, %cst_44 [1] : vector<16x48xf32> to vector<16xf32>
    %145 = vector.shape_cast %144 : vector<16xf32> to vector<16x1xf32>
    %cst_45 = arith.constant 4.800000e+01 : f32
    %146 = vector.broadcast %cst_45 : f32 to vector<16x1xf32>
    %147 = arith.divf %145, %146 : vector<16x1xf32>
    %148 = vector.broadcast %147 : vector<16x1xf32> to vector<16x48xf32>
    %149 = arith.subf %143, %148 : vector<16x48xf32>
    %150 = arith.mulf %149, %149 : vector<16x48xf32>
    %cst_46 = arith.constant dense<0.000000e+00> : vector<16xf32>
    %151 = vector.multi_reduction <add>, %150, %cst_46 [1] : vector<16x48xf32> to vector<16xf32>
    %152 = vector.shape_cast %151 : vector<16xf32> to vector<16x1xf32>
    %cst_47 = arith.constant 4.800000e+01 : f32
    %153 = vector.broadcast %cst_47 : f32 to vector<16x1xf32>
    %154 = arith.divf %152, %153 : vector<16x1xf32>
    %155 = vector.broadcast %147 : vector<16x1xf32> to vector<16x48xf32>
    %156 = arith.subf %143, %155 : vector<16x48xf32>
    %cst_48 = arith.constant 9.99999974E-6 : f32
    %157 = vector.broadcast %cst_48 : f32 to vector<16x1xf32>
    %158 = arith.addf %154, %157 : vector<16x1xf32>
    %159 = math.rsqrt %158 : vector<16x1xf32>
    %160 = vector.broadcast %159 : vector<16x1xf32> to vector<16x48xf32>
    %161 = arith.mulf %156, %160 : vector<16x48xf32>
    %162 = vector.broadcast %5 : vector<1x48xf32> to vector<16x48xf32>
    %163 = arith.mulf %161, %162 : vector<16x48xf32>
    %164 = vector.broadcast %6 : vector<1x48xf32> to vector<16x48xf32>
    %165 = arith.addf %163, %164 : vector<16x48xf32>
    %c1 = arith.constant 1 : index
    %c0_49 = arith.constant 0 : index
    %c0_50 = arith.constant 0 : index
    %166 = vector.load %arg3[%c1, %c0_49, %c0_50] : memref<2x48x144xf32, #tpu.memory_space<vmem>>, vector<1x48x144xf32>
    %167 = vector.shape_cast %166 : vector<1x48x144xf32> to vector<48x144xf32>
    %cst_51 = arith.constant dense<0.000000e+00> : vector<16x144xf32>
    %168 = tpu.matmul %165, %167, %cst_51 {dimension_numbers = #tpu.dot_dimension_numbers<[1], [0], [0], [1], [0, 0, 1, 1], [], []>} : vector<16x48xf32>, vector<48x144xf32>, vector<16x144xf32> -> vector<16x144xf32>
    %169 = vector.shape_cast %168 : vector<16x144xf32> to vector<2x8x144xf32>
    %170 = vector.extract_strided_slice %169 {offsets = [0, 0, 0], sizes = [2, 8, 8], strides = [1, 1, 1]} : vector<2x8x144xf32> to vector<2x8x8xf32>
    %171 = vector.extract_strided_slice %169 {offsets = [0, 0, 48], sizes = [2, 8, 8], strides = [1, 1, 1]} : vector<2x8x144xf32> to vector<2x8x8xf32>
    %172 = vector.extract_strided_slice %169 {offsets = [0, 0, 96], sizes = [2, 8, 8], strides = [1, 1, 1]} : vector<2x8x144xf32> to vector<2x8x8xf32>
    "tpu.trace_start"() <{level = 10 : i32, message = "bnd,bmd->bnm"}> : () -> ()
    %cst_52 = arith.constant dense<0.000000e+00> : vector<2x8x8xf32>
    %173 = tpu.matmul %170, %171, %cst_52 {dimension_numbers = #tpu.dot_dimension_numbers<[2], [2], [1], [1], [0, 0, 0, 1, 1, 1], [0], [0]>} : vector<2x8x8xf32>, vector<2x8x8xf32>, vector<2x8x8xf32> -> vector<2x8x8xf32>
    "tpu.trace_stop"() : () -> ()
    %cst_53 = arith.constant 0.353553385 : f32
    %174 = vector.broadcast %cst_53 : f32 to vector<2x8x8xf32>
    %175 = arith.mulf %173, %174 : vector<2x8x8xf32>
    %cst_54 = arith.constant dense<0xFF800000> : vector<2x8xf32>
    %176 = vector.multi_reduction <maximumf>, %175, %cst_54 [2] : vector<2x8x8xf32> to vector<2x8xf32>
    %177 = vector.shape_cast %176 : vector<2x8xf32> to vector<2x8x1xf32>
    %178 = vector.broadcast %177 : vector<2x8x1xf32> to vector<2x8x8xf32>
    %179 = arith.subf %175, %178 : vector<2x8x8xf32>
    %180 = math.exp %179 : vector<2x8x8xf32>
    %cst_55 = arith.constant dense<0.000000e+00> : vector<2x8xf32>
    %181 = vector.multi_reduction <add>, %180, %cst_55 [2] : vector<2x8x8xf32> to vector<2x8xf32>
    %182 = vector.shape_cast %181 : vector<2x8xf32> to vector<2x8x1xf32>
    %183 = tpu.reciprocal %182 {approx = true} : vector<2x8x1xf32> -> vector<2x8x1xf32>
    %184 = vector.broadcast %183 : vector<2x8x1xf32> to vector<2x8x8xf32>
    %185 = arith.mulf %180, %184 : vector<2x8x8xf32>
    "tpu.trace_start"() <{level = 10 : i32, message = "bnm,bmd->bnd"}> : () -> ()
    %cst_56 = arith.constant dense<0.000000e+00> : vector<2x8x8xf32>
    %186 = tpu.matmul %185, %172, %cst_56 {dimension_numbers = #tpu.dot_dimension_numbers<[2], [1], [1], [2], [0, 0, 0, 1, 1, 2], [0], [0]>} : vector<2x8x8xf32>, vector<2x8x8xf32>, vector<2x8x8xf32> -> vector<2x8x8xf32>
    "tpu.trace_stop"() : () -> ()
    %187 = vector.extract_strided_slice %169 {offsets = [0, 0, 8], sizes = [2, 8, 8], strides = [1, 1, 1]} : vector<2x8x144xf32> to vector<2x8x8xf32>
    %188 = vector.extract_strided_slice %169 {offsets = [0, 0, 56], sizes = [2, 8, 8], strides = [1, 1, 1]} : vector<2x8x144xf32> to vector<2x8x8xf32>
    %189 = vector.extract_strided_slice %169 {offsets = [0, 0, 104], sizes = [2, 8, 8], strides = [1, 1, 1]} : vector<2x8x144xf32> to vector<2x8x8xf32>
    "tpu.trace_start"() <{level = 10 : i32, message = "bnd,bmd->bnm"}> : () -> ()
    %cst_57 = arith.constant dense<0.000000e+00> : vector<2x8x8xf32>
    %190 = tpu.matmul %187, %188, %cst_57 {dimension_numbers = #tpu.dot_dimension_numbers<[2], [2], [1], [1], [0, 0, 0, 1, 1, 1], [0], [0]>} : vector<2x8x8xf32>, vector<2x8x8xf32>, vector<2x8x8xf32> -> vector<2x8x8xf32>
    "tpu.trace_stop"() : () -> ()
    %cst_58 = arith.constant 0.353553385 : f32
    %191 = vector.broadcast %cst_58 : f32 to vector<2x8x8xf32>
    %192 = arith.mulf %190, %191 : vector<2x8x8xf32>
    %cst_59 = arith.constant dense<0xFF800000> : vector<2x8xf32>
    %193 = vector.multi_reduction <maximumf>, %192, %cst_59 [2] : vector<2x8x8xf32> to vector<2x8xf32>
    %194 = vector.shape_cast %193 : vector<2x8xf32> to vector<2x8x1xf32>
    %195 = vector.broadcast %194 : vector<2x8x1xf32> to vector<2x8x8xf32>
    %196 = arith.subf %192, %195 : vector<2x8x8xf32>
    %197 = math.exp %196 : vector<2x8x8xf32>
    %cst_60 = arith.constant dense<0.000000e+00> : vector<2x8xf32>
    %198 = vector.multi_reduction <add>, %197, %cst_60 [2] : vector<2x8x8xf32> to vector<2x8xf32>
    %199 = vector.shape_cast %198 : vector<2x8xf32> to vector<2x8x1xf32>
    %200 = tpu.reciprocal %199 {approx = true} : vector<2x8x1xf32> -> vector<2x8x1xf32>
    %201 = vector.broadcast %200 : vector<2x8x1xf32> to vector<2x8x8xf32>
    %202 = arith.mulf %197, %201 : vector<2x8x8xf32>
    "tpu.trace_start"() <{level = 10 : i32, message = "bnm,bmd->bnd"}> : () -> ()
    %cst_61 = arith.constant dense<0.000000e+00> : vector<2x8x8xf32>
    %203 = tpu.matmul %202, %189, %cst_61 {dimension_numbers = #tpu.dot_dimension_numbers<[2], [1], [1], [2], [0, 0, 0, 1, 1, 2], [0], [0]>} : vector<2x8x8xf32>, vector<2x8x8xf32>, vector<2x8x8xf32> -> vector<2x8x8xf32>
    "tpu.trace_stop"() : () -> ()
    %204 = vector.extract_strided_slice %169 {offsets = [0, 0, 16], sizes = [2, 8, 8], strides = [1, 1, 1]} : vector<2x8x144xf32> to vector<2x8x8xf32>
    %205 = vector.extract_strided_slice %169 {offsets = [0, 0, 64], sizes = [2, 8, 8], strides = [1, 1, 1]} : vector<2x8x144xf32> to vector<2x8x8xf32>
    %206 = vector.extract_strided_slice %169 {offsets = [0, 0, 112], sizes = [2, 8, 8], strides = [1, 1, 1]} : vector<2x8x144xf32> to vector<2x8x8xf32>
    "tpu.trace_start"() <{level = 10 : i32, message = "bnd,bmd->bnm"}> : () -> ()
    %cst_62 = arith.constant dense<0.000000e+00> : vector<2x8x8xf32>
    %207 = tpu.matmul %204, %205, %cst_62 {dimension_numbers = #tpu.dot_dimension_numbers<[2], [2], [1], [1], [0, 0, 0, 1, 1, 1], [0], [0]>} : vector<2x8x8xf32>, vector<2x8x8xf32>, vector<2x8x8xf32> -> vector<2x8x8xf32>
    "tpu.trace_stop"() : () -> ()
    %cst_63 = arith.constant 0.353553385 : f32
    %208 = vector.broadcast %cst_63 : f32 to vector<2x8x8xf32>
    %209 = arith.mulf %207, %208 : vector<2x8x8xf32>
    %cst_64 = arith.constant dense<0xFF800000> : vector<2x8xf32>
    %210 = vector.multi_reduction <maximumf>, %209, %cst_64 [2] : vector<2x8x8xf32> to vector<2x8xf32>
    %211 = vector.shape_cast %210 : vector<2x8xf32> to vector<2x8x1xf32>
    %212 = vector.broadcast %211 : vector<2x8x1xf32> to vector<2x8x8xf32>
    %213 = arith.subf %209, %212 : vector<2x8x8xf32>
    %214 = math.exp %213 : vector<2x8x8xf32>
    %cst_65 = arith.constant dense<0.000000e+00> : vector<2x8xf32>
    %215 = vector.multi_reduction <add>, %214, %cst_65 [2] : vector<2x8x8xf32> to vector<2x8xf32>
    %216 = vector.shape_cast %215 : vector<2x8xf32> to vector<2x8x1xf32>
    %217 = tpu.reciprocal %216 {approx = true} : vector<2x8x1xf32> -> vector<2x8x1xf32>
    %218 = vector.broadcast %217 : vector<2x8x1xf32> to vector<2x8x8xf32>
    %219 = arith.mulf %214, %218 : vector<2x8x8xf32>
    "tpu.trace_start"() <{level = 10 : i32, message = "bnm,bmd->bnd"}> : () -> ()
    %cst_66 = arith.constant dense<0.000000e+00> : vector<2x8x8xf32>
    %220 = tpu.matmul %219, %206, %cst_66 {dimension_numbers = #tpu.dot_dimension_numbers<[2], [1], [1], [2], [0, 0, 0, 1, 1, 2], [0], [0]>} : vector<2x8x8xf32>, vector<2x8x8xf32>, vector<2x8x8xf32> -> vector<2x8x8xf32>
    "tpu.trace_stop"() : () -> ()
    %221 = vector.extract_strided_slice %169 {offsets = [0, 0, 24], sizes = [2, 8, 8], strides = [1, 1, 1]} : vector<2x8x144xf32> to vector<2x8x8xf32>
    %222 = vector.extract_strided_slice %169 {offsets = [0, 0, 72], sizes = [2, 8, 8], strides = [1, 1, 1]} : vector<2x8x144xf32> to vector<2x8x8xf32>
    %223 = vector.extract_strided_slice %169 {offsets = [0, 0, 120], sizes = [2, 8, 8], strides = [1, 1, 1]} : vector<2x8x144xf32> to vector<2x8x8xf32>
    "tpu.trace_start"() <{level = 10 : i32, message = "bnd,bmd->bnm"}> : () -> ()
    %cst_67 = arith.constant dense<0.000000e+00> : vector<2x8x8xf32>
    %224 = tpu.matmul %221, %222, %cst_67 {dimension_numbers = #tpu.dot_dimension_numbers<[2], [2], [1], [1], [0, 0, 0, 1, 1, 1], [0], [0]>} : vector<2x8x8xf32>, vector<2x8x8xf32>, vector<2x8x8xf32> -> vector<2x8x8xf32>
    "tpu.trace_stop"() : () -> ()
    %cst_68 = arith.constant 0.353553385 : f32
    %225 = vector.broadcast %cst_68 : f32 to vector<2x8x8xf32>
    %226 = arith.mulf %224, %225 : vector<2x8x8xf32>
    %cst_69 = arith.constant dense<0xFF800000> : vector<2x8xf32>
    %227 = vector.multi_reduction <maximumf>, %226, %cst_69 [2] : vector<2x8x8xf32> to vector<2x8xf32>
    %228 = vector.shape_cast %227 : vector<2x8xf32> to vector<2x8x1xf32>
    %229 = vector.broadcast %228 : vector<2x8x1xf32> to vector<2x8x8xf32>
    %230 = arith.subf %226, %229 : vector<2x8x8xf32>
    %231 = math.exp %230 : vector<2x8x8xf32>
    %cst_70 = arith.constant dense<0.000000e+00> : vector<2x8xf32>
    %232 = vector.multi_reduction <add>, %231, %cst_70 [2] : vector<2x8x8xf32> to vector<2x8xf32>
    %233 = vector.shape_cast %232 : vector<2x8xf32> to vector<2x8x1xf32>
    %234 = tpu.reciprocal %233 {approx = true} : vector<2x8x1xf32> -> vector<2x8x1xf32>
    %235 = vector.broadcast %234 : vector<2x8x1xf32> to vector<2x8x8xf32>
    %236 = arith.mulf %231, %235 : vector<2x8x8xf32>
    "tpu.trace_start"() <{level = 10 : i32, message = "bnm,bmd->bnd"}> : () -> ()
    %cst_71 = arith.constant dense<0.000000e+00> : vector<2x8x8xf32>
    %237 = tpu.matmul %236, %223, %cst_71 {dimension_numbers = #tpu.dot_dimension_numbers<[2], [1], [1], [2], [0, 0, 0, 1, 1, 2], [0], [0]>} : vector<2x8x8xf32>, vector<2x8x8xf32>, vector<2x8x8xf32> -> vector<2x8x8xf32>
    "tpu.trace_stop"() : () -> ()
    %238 = vector.extract_strided_slice %169 {offsets = [0, 0, 32], sizes = [2, 8, 8], strides = [1, 1, 1]} : vector<2x8x144xf32> to vector<2x8x8xf32>
    %239 = vector.extract_strided_slice %169 {offsets = [0, 0, 80], sizes = [2, 8, 8], strides = [1, 1, 1]} : vector<2x8x144xf32> to vector<2x8x8xf32>
    %240 = vector.extract_strided_slice %169 {offsets = [0, 0, 128], sizes = [2, 8, 8], strides = [1, 1, 1]} : vector<2x8x144xf32> to vector<2x8x8xf32>
    "tpu.trace_start"() <{level = 10 : i32, message = "bnd,bmd->bnm"}> : () -> ()
    %cst_72 = arith.constant dense<0.000000e+00> : vector<2x8x8xf32>
    %241 = tpu.matmul %238, %239, %cst_72 {dimension_numbers = #tpu.dot_dimension_numbers<[2], [2], [1], [1], [0, 0, 0, 1, 1, 1], [0], [0]>} : vector<2x8x8xf32>, vector<2x8x8xf32>, vector<2x8x8xf32> -> vector<2x8x8xf32>
    "tpu.trace_stop"() : () -> ()
    %cst_73 = arith.constant 0.353553385 : f32
    %242 = vector.broadcast %cst_73 : f32 to vector<2x8x8xf32>
    %243 = arith.mulf %241, %242 : vector<2x8x8xf32>
    %cst_74 = arith.constant dense<0xFF800000> : vector<2x8xf32>
    %244 = vector.multi_reduction <maximumf>, %243, %cst_74 [2] : vector<2x8x8xf32> to vector<2x8xf32>
    %245 = vector.shape_cast %244 : vector<2x8xf32> to vector<2x8x1xf32>
    %246 = vector.broadcast %245 : vector<2x8x1xf32> to vector<2x8x8xf32>
    %247 = arith.subf %243, %246 : vector<2x8x8xf32>
    %248 = math.exp %247 : vector<2x8x8xf32>
    %cst_75 = arith.constant dense<0.000000e+00> : vector<2x8xf32>
    %249 = vector.multi_reduction <add>, %248, %cst_75 [2] : vector<2x8x8xf32> to vector<2x8xf32>
    %250 = vector.shape_cast %249 : vector<2x8xf32> to vector<2x8x1xf32>
    %251 = tpu.reciprocal %250 {approx = true} : vector<2x8x1xf32> -> vector<2x8x1xf32>
    %252 = vector.broadcast %251 : vector<2x8x1xf32> to vector<2x8x8xf32>
    %253 = arith.mulf %248, %252 : vector<2x8x8xf32>
    "tpu.trace_start"() <{level = 10 : i32, message = "bnm,bmd->bnd"}> : () -> ()
    %cst_76 = arith.constant dense<0.000000e+00> : vector<2x8x8xf32>
    %254 = tpu.matmul %253, %240, %cst_76 {dimension_numbers = #tpu.dot_dimension_numbers<[2], [1], [1], [2], [0, 0, 0, 1, 1, 2], [0], [0]>} : vector<2x8x8xf32>, vector<2x8x8xf32>, vector<2x8x8xf32> -> vector<2x8x8xf32>
    "tpu.trace_stop"() : () -> ()
    %255 = vector.extract_strided_slice %169 {offsets = [0, 0, 40], sizes = [2, 8, 8], strides = [1, 1, 1]} : vector<2x8x144xf32> to vector<2x8x8xf32>
    %256 = vector.extract_strided_slice %169 {offsets = [0, 0, 88], sizes = [2, 8, 8], strides = [1, 1, 1]} : vector<2x8x144xf32> to vector<2x8x8xf32>
    %257 = vector.extract_strided_slice %169 {offsets = [0, 0, 136], sizes = [2, 8, 8], strides = [1, 1, 1]} : vector<2x8x144xf32> to vector<2x8x8xf32>
    "tpu.trace_start"() <{level = 10 : i32, message = "bnd,bmd->bnm"}> : () -> ()
    %cst_77 = arith.constant dense<0.000000e+00> : vector<2x8x8xf32>
    %258 = tpu.matmul %255, %256, %cst_77 {dimension_numbers = #tpu.dot_dimension_numbers<[2], [2], [1], [1], [0, 0, 0, 1, 1, 1], [0], [0]>} : vector<2x8x8xf32>, vector<2x8x8xf32>, vector<2x8x8xf32> -> vector<2x8x8xf32>
    "tpu.trace_stop"() : () -> ()
    %cst_78 = arith.constant 0.353553385 : f32
    %259 = vector.broadcast %cst_78 : f32 to vector<2x8x8xf32>
    %260 = arith.mulf %258, %259 : vector<2x8x8xf32>
    %cst_79 = arith.constant dense<0xFF800000> : vector<2x8xf32>
    %261 = vector.multi_reduction <maximumf>, %260, %cst_79 [2] : vector<2x8x8xf32> to vector<2x8xf32>
    %262 = vector.shape_cast %261 : vector<2x8xf32> to vector<2x8x1xf32>
    %263 = vector.broadcast %262 : vector<2x8x1xf32> to vector<2x8x8xf32>
    %264 = arith.subf %260, %263 : vector<2x8x8xf32>
    %265 = math.exp %264 : vector<2x8x8xf32>
    %cst_80 = arith.constant dense<0.000000e+00> : vector<2x8xf32>
    %266 = vector.multi_reduction <add>, %265, %cst_80 [2] : vector<2x8x8xf32> to vector<2x8xf32>
    %267 = vector.shape_cast %266 : vector<2x8xf32> to vector<2x8x1xf32>
    %268 = tpu.reciprocal %267 {approx = true} : vector<2x8x1xf32> -> vector<2x8x1xf32>
    %269 = vector.broadcast %268 : vector<2x8x1xf32> to vector<2x8x8xf32>
    %270 = arith.mulf %265, %269 : vector<2x8x8xf32>
    "tpu.trace_start"() <{level = 10 : i32, message = "bnm,bmd->bnd"}> : () -> ()
    %cst_81 = arith.constant dense<0.000000e+00> : vector<2x8x8xf32>
    %271 = tpu.matmul %270, %257, %cst_81 {dimension_numbers = #tpu.dot_dimension_numbers<[2], [1], [1], [2], [0, 0, 0, 1, 1, 2], [0], [0]>} : vector<2x8x8xf32>, vector<2x8x8xf32>, vector<2x8x8xf32> -> vector<2x8x8xf32>
    "tpu.trace_stop"() : () -> ()
    %272 = tpu.concatenate %186, %203, %220, %237, %254, %271 in 2 : vector<2x8x8xf32>, vector<2x8x8xf32>, vector<2x8x8xf32>, vector<2x8x8xf32>, vector<2x8x8xf32>, vector<2x8x8xf32> -> vector<2x8x48xf32>
    %273 = vector.shape_cast %272 : vector<2x8x48xf32> to vector<16x48xf32>
    %274 = arith.addf %273, %165 : vector<16x48xf32>
    %cst_82 = arith.constant dense<0.000000e+00> : vector<16xf32>
    %275 = vector.multi_reduction <add>, %274, %cst_82 [1] : vector<16x48xf32> to vector<16xf32>
    %276 = vector.shape_cast %275 : vector<16xf32> to vector<16x1xf32>
    %cst_83 = arith.constant 4.800000e+01 : f32
    %277 = vector.broadcast %cst_83 : f32 to vector<16x1xf32>
    %278 = arith.divf %276, %277 : vector<16x1xf32>
    %279 = vector.broadcast %278 : vector<16x1xf32> to vector<16x48xf32>
    %280 = arith.subf %274, %279 : vector<16x48xf32>
    %281 = arith.mulf %280, %280 : vector<16x48xf32>
    %cst_84 = arith.constant dense<0.000000e+00> : vector<16xf32>
    %282 = vector.multi_reduction <add>, %281, %cst_84 [1] : vector<16x48xf32> to vector<16xf32>
    %283 = vector.shape_cast %282 : vector<16xf32> to vector<16x1xf32>
    %cst_85 = arith.constant 4.800000e+01 : f32
    %284 = vector.broadcast %cst_85 : f32 to vector<16x1xf32>
    %285 = arith.divf %283, %284 : vector<16x1xf32>
    %286 = vector.broadcast %278 : vector<16x1xf32> to vector<16x48xf32>
    %287 = arith.subf %274, %286 : vector<16x48xf32>
    %cst_86 = arith.constant 9.99999974E-6 : f32
    %288 = vector.broadcast %cst_86 : f32 to vector<16x1xf32>
    %289 = arith.addf %285, %288 : vector<16x1xf32>
    %290 = math.rsqrt %289 : vector<16x1xf32>
    %291 = vector.broadcast %290 : vector<16x1xf32> to vector<16x48xf32>
    %292 = arith.mulf %287, %291 : vector<16x48xf32>
    %293 = vector.broadcast %5 : vector<1x48xf32> to vector<16x48xf32>
    %294 = arith.mulf %292, %293 : vector<16x48xf32>
    %295 = vector.broadcast %6 : vector<1x48xf32> to vector<16x48xf32>
    %296 = arith.addf %294, %295 : vector<16x48xf32>
    %297 = vector.broadcast %7 : vector<1x48xf32> to vector<16x48xf32>
    %298 = arith.mulf %296, %297 : vector<16x48xf32>
    %cst_87 = arith.constant dense<0.000000e+00> : vector<16xf32>
    %299 = vector.multi_reduction <add>, %298, %cst_87 [1] : vector<16x48xf32> to vector<16xf32>
    %300 = vector.shape_cast %299 : vector<16xf32> to vector<16x1xf32>
    %301 = vector.shape_cast %300 : vector<16x1xf32> to vector<2x8x1xf32>
    %cst_88 = arith.constant dense<0xFF800000> : vector<2x1xf32>
    %302 = vector.multi_reduction <maximumf>, %301, %cst_88 [1] : vector<2x8x1xf32> to vector<2x1xf32>
    %303 = vector.shape_cast %302 : vector<2x1xf32> to vector<2x1x1xf32>
    %304 = vector.broadcast %303 : vector<2x1x1xf32> to vector<2x8x1xf32>
    %305 = arith.subf %301, %304 : vector<2x8x1xf32>
    %306 = math.exp %305 : vector<2x8x1xf32>
    %cst_89 = arith.constant dense<0.000000e+00> : vector<2x1xf32>
    %307 = vector.multi_reduction <add>, %306, %cst_89 [1] : vector<2x8x1xf32> to vector<2x1xf32>
    %308 = vector.shape_cast %307 : vector<2x1xf32> to vector<2x1x1xf32>
    %309 = tpu.reciprocal %308 {approx = true} : vector<2x1x1xf32> -> vector<2x1x1xf32>
    %310 = vector.broadcast %309 : vector<2x1x1xf32> to vector<2x8x1xf32>
    %311 = arith.mulf %306, %310 : vector<2x8x1xf32>
    %312 = vector.shape_cast %296 : vector<16x48xf32> to vector<2x8x48xf32>
    %313 = vector.broadcast %311 : vector<2x8x1xf32> to vector<2x8x48xf32>
    %314 = arith.mulf %313, %312 : vector<2x8x48xf32>
    %cst_90 = arith.constant dense<0.000000e+00> : vector<2x48xf32>
    %315 = vector.multi_reduction <add>, %314, %cst_90 [1] : vector<2x8x48xf32> to vector<2x48xf32>
    %c0_91 = arith.constant 0 : index
    %c0_92 = arith.constant 0 : index
    %316 = vector.load %arg4[%c0_91, %c0_92] : memref<48x128xf32, #tpu.memory_space<vmem>>, vector<48x128xf32>
    %cst_93 = arith.constant dense<0.000000e+00> : vector<2x128xf32>
    %317 = tpu.matmul %315, %316, %cst_93 {dimension_numbers = #tpu.dot_dimension_numbers<[1], [0], [0], [1], [0, 0, 1, 1], [], []>} : vector<2x48xf32>, vector<48x128xf32>, vector<2x128xf32> -> vector<2x128xf32>
    %318 = vector.broadcast %8 : vector<1x128xf32> to vector<2x128xf32>
    %319 = arith.addf %317, %318 : vector<2x128xf32>
    %c0_94 = arith.constant 0 : index
    %c0_95 = arith.constant 0 : index
    %320 = vector.load %arg5[%c0_94, %c0_95] : memref<2x128xf32, #tpu.memory_space<vmem>>, vector<2x128xf32>
    tpu.vector_store %arg5[%c0_94, %c0_95], %319 {strides = array<i32>} : memref<2x128xf32, #tpu.memory_space<vmem>>, vector<2x128xf32>,
    return
  }
}

</mosaic_0001>

<llo_original>
// kernel: mhsal_forward.1
$region0: #{mhsal_forward.1}
  #allocation0 [shape = 'u32[]', space=smem, size = 0x4, offset = 0x4, fixed_abs, tag = 'smem constant byte address 0x4 - core index']
  #allocation1 [shape = 'u32[72,128]{1,0:T(1,128)}', space=vmem, size = 0x9000, scoped, tag = 'internal scratch']
  %s0 = inlined_call_operand.hbm [shape: f32[16,32], index: 0, kind: input, shape index: {}]
  %s1 = inlined_call_operand.hbm [shape: f32[7,128], index: 1, kind: input, shape index: {}]
  %s2 = inlined_call_operand.hbm [shape: f32[32,48], index: 2, kind: input, shape index: {}]
  %s3 = inlined_call_operand.hbm [shape: f32[2,48,144], index: 3, kind: input, shape index: {}]
  %s4 = inlined_call_operand.hbm [shape: f32[48,128], index: 4, kind: input, shape index: {}]
  %s5 = inlined_call_operand.hbm [shape: f32[2,128], index: 5, kind: output, shape index: {}]
  %s6 = sld [smem:[#allocation0]]
  $region50: #{mhsal_forward.1} parent=0
    _
  %s8 = ssub.s32 1, %s6
  %s9 = scalar_select 0, %s8, %s6
  $region1: #{mhsal_forward.1} parent=0
    #allocation2 [shape = 'u8[8192]{0}', space=vmem, size = 0x2000, scoped, tag = 'input window, operand 0, single buffered']
    #allocation3 [shape = 's32[1]{0}', space=sflag, size = 0x4, scoped, tag = 'scoped memory for mhsal_forward.1']
    #allocation4 [shape = 's32[1]{0}', space=sflag, size = 0x4, scoped, tag = 'scoped memory for mhsal_forward.1']
    #allocation5 [shape = 'u8[4096]{0}', space=vmem, size = 0x1000, scoped, tag = 'input window, operand 1, single buffered']
    #allocation6 [shape = 's32[1]{0}', space=sflag, size = 0x4, scoped, tag = 'scoped memory for mhsal_forward.1']
    #allocation7 [shape = 'u8[16384]{0}', space=vmem, size = 0x4000, scoped, tag = 'input window, operand 2, single buffered']
    #allocation8 [shape = 'u8[98304]{0}', space=vmem, size = 0x18000, scoped, tag = 'input window, operand 3, single buffered']
    #allocation9 [shape = 's32[1]{0}', space=sflag, size = 0x4, scoped, tag = 'scoped memory for mhsal_forward.1']
    #allocation10 [shape = 'u8[24576]{0}', space=vmem, size = 0x6000, scoped, tag = 'input window, operand 4, single buffered']
    #allocation11 [shape = 'u8[1024]{0}', space=vmem, size = 0x400, scoped, tag = 'output window, operand 0, single buffered']
    %10 = vsyncpa [#allocation3], 0
    %11 = vsyncpa [#allocation6], 0
    %12 = vsyncpa [#allocation9], 0
    %13 = vsyncpa [#allocation4], 0
    // Predicated region
    $region2: #{mhsal_forward.1} parent=1 // pred_check
      _
    $region3: #{mhsal_forward.1} parent=1 // pred_check_branch
      %15 = sbr.rel (0) target = $region5
    $region4: #{mhsal_forward.1} parent=1 // pred_region
      %17 = vsyncadd [#allocation3], 0
      %s18 = sshll.u32 %s0, 4
      %s19 = int_to_ptr.hbm [resolvable:$true] %s18
      %s20 = sshll.u32 [#allocation2], 4
      %s21 = int_to_ptr.vmem [resolvable:$true] %s20
      %26 = dma.hbm_to_vmem [thread:$0]  %s19, 256, %s21, [#allocation3], 128, 128, 8
    $region5: #{mhsal_forward.1} parent=1 // pred_fallthru
      _
    // Predicated region
    $region6: #{mhsal_forward.1} parent=1 // pred_check
      _
    $region7: #{mhsal_forward.1} parent=1 // pred_check_branch
      %28 = sbr.rel (0) target = $region9
    $region8: #{mhsal_forward.1} parent=1 // pred_region
      %30 = vsyncadd [#allocation6], 0
      %s32 = sshll.u32 %s1, 4
      %s33 = int_to_ptr.hbm [resolvable:$true] %s32
      %s34 = sshll.u32 [#allocation5], 4
      %s35 = int_to_ptr.vmem [resolvable:$true] %s34
      %37 = dma.hbm_to_vmem [thread:$0]  %s33, 128, %s35, [#allocation6]
    $region9: #{mhsal_forward.1} parent=1 // pred_fallthru
      _
    // Predicated region
    $region10: #{mhsal_forward.1} parent=1 // pred_check
      _
    $region11: #{mhsal_forward.1} parent=1 // pred_check_branch
      %39 = sbr.rel (0) target = $region13
    $region12: #{mhsal_forward.1} parent=1 // pred_region
      %41 = vsyncadd [#allocation6], 0
      %s42 = sshll.u32 %s2, 4
      %s43 = int_to_ptr.hbm [resolvable:$true] %s42
      %s44 = sshll.u32 [#allocation7], 4
      %s45 = int_to_ptr.vmem [resolvable:$true] %s44
      %50 = dma.hbm_to_vmem [thread:$0]  %s43, 512, %s45, [#allocation6], 128, 128, 8
    $region13: #{mhsal_forward.1} parent=1 // pred_fallthru
      _
    // Predicated region
    $region14: #{mhsal_forward.1} parent=1 // pred_check
      _
    $region15: #{mhsal_forward.1} parent=1 // pred_check_branch
      %52 = sbr.rel (0) target = $region17
    $region16: #{mhsal_forward.1} parent=1 // pred_region
      %54 = vsyncadd [#allocation9], 0
      %s55 = sshll.u32 %s3, 4
      %s56 = int_to_ptr.hbm [resolvable:$true] %s55
      %s57 = sshll.u32 [#allocation8], 4
      %s58 = int_to_ptr.vmem [resolvable:$true] %s57
      %63 = dma.hbm_to_vmem [thread:$0]  %s56, 3072, %s58, [#allocation9], 256, 256, 16
    $region17: #{mhsal_forward.1} parent=1 // pred_fallthru
      _
    // Predicated region
    $region18: #{mhsal_forward.1} parent=1 // pred_check
      _
    $region19: #{mhsal_forward.1} parent=1 // pred_check_branch
      %65 = sbr.rel (0) target = $region21
    $region20: #{mhsal_forward.1} parent=1 // pred_region
      %67 = vsyncadd [#allocation9], 0
      %s68 = sshll.u32 %s4, 4
      %s69 = int_to_ptr.hbm [resolvable:$true] %s68
      %s70 = sshll.u32 [#allocation10], 4
      %s71 = int_to_ptr.vmem [resolvable:$true] %s70
      %76 = dma.hbm_to_vmem [thread:$0]  %s69, 768, %s71, [#allocation9], 128, 128, 8
    $region21: #{mhsal_forward.1} parent=1 // pred_fallthru
      _
    // Predicated region
    $region22: #{mhsal_forward.1} parent=1 // pred_check
      _
    $region23: #{mhsal_forward.1} parent=1 // pred_check_branch
      %78 = sbr.rel (0) target = $region25
    $region24: #{mhsal_forward.1} parent=1 // pred_region
      %80 = dma.done [#allocation3], 256
    $region25: #{mhsal_forward.1} parent=1 // pred_fallthru
      _
    // Predicated region
    $region26: #{mhsal_forward.1} parent=1 // pred_check
      _
    $region27: #{mhsal_forward.1} parent=1 // pred_check_branch
      %82 = sbr.rel (0) target = $region29
    $region28: #{mhsal_forward.1} parent=1 // pred_region
      %84 = dma.done [#allocation6], 128
    $region29: #{mhsal_forward.1} parent=1 // pred_fallthru
      _
    // Predicated region
    $region30: #{mhsal_forward.1} parent=1 // pred_check
      _
    $region31: #{mhsal_forward.1} parent=1 // pred_check_branch
      %86 = sbr.rel (0) target = $region33
    $region32: #{mhsal_forward.1} parent=1 // pred_region
      %88 = dma.done [#allocation6], 512
    $region33: #{mhsal_forward.1} parent=1 // pred_fallthru
      _
    // Predicated region
    $region34: #{mhsal_forward.1} parent=1 // pred_check
      _
    $region35: #{mhsal_forward.1} parent=1 // pred_check_branch
      %90 = sbr.rel (0) target = $region37
    $region36: #{mhsal_forward.1} parent=1 // pred_region
      %92 = dma.done [#allocation9], 3072
    $region37: #{mhsal_forward.1} parent=1 // pred_fallthru
      _
    // Predicated region
    $region38: #{mhsal_forward.1} parent=1 // pred_check
      _
    $region39: #{mhsal_forward.1} parent=1 // pred_check_branch
      %94 = sbr.rel (0) target = $region41
    $region40: #{mhsal_forward.1} parent=1 // pred_region
      %96 = dma.done [#allocation9], 768
    $region41: #{mhsal_forward.1} parent=1 // pred_fallthru
      _
    %v97 = vld [vmem:[#allocation2] sm:$0xff]
    %v98 = vld [vmem:[#allocation2 + $0x8] sm:$0xff]
    %v99 = vld [vmem:[#allocation5] sm:$0x7f]
    %vm100 = vcmask 261120
    %v101 = vsel %vm100, %v97, 0.0
    %102 = vadd.xlane.f32.xlu0 %v101
    %v103 = vpop.xlane.xlu0 %102
    %v104 = vsel %vm100, %v98, 0.0
    %105 = vadd.xlane.f32.xlu0 %v104
    %v106 = vpop.xlane.xlu0 %105
    %v107 = vrcp.pop 32.0
    %v108 = vmul.f32 32.0, %v107
    %v109 = vsub.f32 1.0, %v108
    %v110 = vmul.f32 %v107, %v109
    %v111 = vadd.f32 %v107, %v110
    %vm112 = vweird.f32 %v107
    %v113 = vsel %vm112, %v107, %v111
    %v114 = vmul.f32 %v103, %v113
    %v115 = vmul.f32 %v106, %v113
    %v116 = vsub.f32 %v97, %v114
    %v117 = vsub.f32 %v98, %v115
    %v118 = vmul.f32 %v116, %v116
    %v119 = vmul.f32 %v117, %v117
    %v120 = vsel %vm100, %v118, 0.0
    %121 = vadd.xlane.f32.xlu0 %v120
    %v122 = vpop.xlane.xlu0 %121
    %v123 = vsel %vm100, %v119, 0.0
    %124 = vadd.xlane.f32.xlu0 %v123
    %v125 = vpop.xlane.xlu0 %124
    %v126 = vmul.f32 %v122, %v113
    %v127 = vmul.f32 %v125, %v113
    %v128 = vadd.f32 %v126, 1e-05
    %v129 = vadd.f32 %v127, 1e-05
    %v130 = vrsqrt.pop %v128
    %v131 = vmul.f32 %v130, %v128
    %v132 = vmul.f32 %v131, %v130
    %v133 = vmul.f32 0.5, %v132
    %v134 = vsub.f32 1.5, %v133
    %v135 = vmul.f32 %v130, %v134
    %vm136 = vweird.f32 %v128
    %vm137 = vweird.f32 %v130
    %vm138 = vmor %vm136, %vm137
    %v139 = vsel %vm138, %v130, %v135
    %v140 = vrsqrt.pop %v129
    %v141 = vmul.f32 %v140, %v129
    %v142 = vmul.f32 %v141, %v140
    %v143 = vmul.f32 0.5, %v142
    %v144 = vsub.f32 1.5, %v143
    %v145 = vmul.f32 %v140, %v144
    %vm146 = vweird.f32 %v129
    %vm147 = vweird.f32 %v140
    %vm148 = vmor %vm146, %vm147
    %v149 = vsel %vm148, %v140, %v145
    %v150 = vmul.f32 %v116, %v139
    %v151 = vmul.f32 %v117, %v149
    %v152 = vperm.slane %v99, 0
    %v153 = vmul.f32 %v150, %v152
    %v154 = vmul.f32 %v151, %v152
    %v155 = vperm.slane %v99, 1
    %v156 = vadd.f32 %v153, %v155
    %v157 = vadd.f32 %v154, %v155
    %v158 = vld [vmem:[#allocation7] sm:$0xff]
    %v159 = vld [vmem:[#allocation7 + $0x8] sm:$0xff]
    %v160 = vld [vmem:[#allocation7 + $0x10] sm:$0xff]
    %v161 = vld [vmem:[#allocation7 + $0x18] sm:$0xff]
    %v162 = vperm.slane %v99, 2
    %v164 = vsel %vm100, %v156, 0
    %v167 = vsel %vm100, %v157, 0
    %169 = vmatpush.msra.mxu0 0.0
    %170 = vmatpush.msra.mxu0 0.0
    %171 = vmatpush.msra.mxu0 0.0
    %172 = vmatpush.msra.mxu0 0.0
    %173 = vmatpush.msra.mxu0 0.0
    %174 = vmatpush.msra.mxu0 0.0
    %175 = vmatpush.msra.mxu0 0.0
    %176 = vmatpush.msra.mxu0 0.0
    %177 = vmatpush.msra.mxu0 0.0
    %178 = vmatpush.msra.mxu0 0.0
    %179 = vmatpush.msra.mxu0 0.0
    %180 = vmatpush.msra.mxu0 0.0
    %181 = vmatpush.msra.mxu0 %v161
    %182 = vmatpush.msra.mxu0 %v160
    %183 = vmatpush.msra.mxu0 %v159
    %184 = vmatpush.msra.mxu0 %v158
    %185 = vmatmul.f32.gmra.mxu0 %v164
    %v186 = vpop.f32.mrf.mxu0
    %v187 = vadd.f32 %v162, %v186
    %188 = vmatmul.f32.gmra.mxu0 %v167
    %v189 = vpop.f32.mrf.mxu0
    %v190 = vadd.f32 %v162, %v189
    %191 = vdwg.mxu0
    %v192 = vld [vmem:[#allocation8] sm:$0xff]
    %v193 = vld [vmem:[#allocation8 + $0x8] sm:$0xff]
    %v194 = vld [vmem:[#allocation8 + $0x10] sm:$0xff]
    %v195 = vld [vmem:[#allocation8 + $0x18] sm:$0xff]
    %v196 = vld [vmem:[#allocation8 + $0x20] sm:$0xff]
    %v197 = vld [vmem:[#allocation8 + $0x28] sm:$0xff]
    %v198 = vld [vmem:[#allocation8 + $0x30] sm:$0xff]
    %v199 = vld [vmem:[#allocation8 + $0x38] sm:$0xff]
    %v200 = vld [vmem:[#allocation8 + $0x40] sm:$0xff]
    %v201 = vld [vmem:[#allocation8 + $0x48] sm:$0xff]
    %v202 = vld [vmem:[#allocation8 + $0x50] sm:$0xff]
    %v203 = vld [vmem:[#allocation8 + $0x58] sm:$0xff]
    %vm204 = vcmask 392192
    %v206 = vsel %vm204, %v187, 0
    %v209 = vsel %vm204, %v190, 0
    %211 = vmatpush.msra.mxu0 0.0
    %212 = vmatpush.msra.mxu0 0.0
    %213 = vmatpush.msra.mxu0 0.0
    %214 = vmatpush.msra.mxu0 0.0
    %215 = vmatpush.msra.mxu0 0.0
    %216 = vmatpush.msra.mxu0 0.0
    %217 = vmatpush.msra.mxu0 0.0
    %218 = vmatpush.msra.mxu0 0.0
    %219 = vmatpush.msra.mxu0 0.0
    %220 = vmatpush.msra.mxu0 0.0
    %221 = vmatpush.msra.mxu0 %v202
    %222 = vmatpush.msra.mxu0 %v200
    %223 = vmatpush.msra.mxu0 %v198
    %224 = vmatpush.msra.mxu0 %v196
    %225 = vmatpush.msra.mxu0 %v194
    %226 = vmatpush.msra.mxu0 %v192
    %227 = vmatmul.f32.gmra.mxu0 %v206
    %v228 = vpop.f32.mrf.mxu0
    %v229 = vadd.f32 0.0, %v228
    %230 = vmatmul.f32.gmra.mxu0 %v209
    %v231 = vpop.f32.mrf.mxu0
    %v232 = vadd.f32 0.0, %v231
    %233 = vdwg.mxu0
    %234 = vmatpush.msra.mxu0 0.0
    %235 = vmatpush.msra.mxu0 0.0
    %236 = vmatpush.msra.mxu0 0.0
    %237 = vmatpush.msra.mxu0 0.0
    %238 = vmatpush.msra.mxu0 0.0
    %239 = vmatpush.msra.mxu0 0.0
    %240 = vmatpush.msra.mxu0 0.0
    %241 = vmatpush.msra.mxu0 0.0
    %242 = vmatpush.msra.mxu0 0.0
    %243 = vmatpush.msra.mxu0 0.0
    %244 = vmatpush.msra.mxu0 %v203
    %245 = vmatpush.msra.mxu0 %v201
    %246 = vmatpush.msra.mxu0 %v199
    %247 = vmatpush.msra.mxu0 %v197
    %248 = vmatpush.msra.mxu0 %v195
    %249 = vmatpush.msra.mxu0 %v193
    %250 = vmatmul.f32.gmra.mxu0 %v206
    %v251 = vpop.f32.mrf.mxu0
    %v252 = vadd.f32 0.0, %v251
    %253 = vmatmul.f32.gmra.mxu0 %v209
    %v254 = vpop.f32.mrf.mxu0
    %v255 = vadd.f32 0.0, %v254
    %256 = vdwg.mxu0
    %258 = vrot.lane.b32.xlu0 %v229, 80
    %v259 = vpop.permute.xlu0 %258
    %vm260 = vcmask 64512
    %v261 = vsel %vm260, %v229, 0
    %v263 = vsel %vm260, %v259, 0
    %265 = vmatpush.xpose.msra.mxu0 0.0
    %266 = vmatpush.xpose.msra.mxu0 0.0
    %267 = vmatpush.xpose.msra.mxu0 0.0
    %268 = vmatpush.xpose.msra.mxu0 0.0
    %269 = vmatpush.xpose.msra.mxu0 0.0
    %270 = vmatpush.xpose.msra.mxu0 0.0
    %271 = vmatpush.xpose.msra.mxu0 0.0
    %272 = vmatpush.xpose.msra.mxu0 0.0
    %273 = vmatpush.xpose.msra.mxu0 0.0
    %274 = vmatpush.xpose.msra.mxu0 0.0
    %275 = vmatpush.xpose.msra.mxu0 0.0
    %276 = vmatpush.xpose.msra.mxu0 0.0
    %277 = vmatpush.xpose.msra.mxu0 0.0
    %278 = vmatpush.xpose.msra.mxu0 0.0
    %279 = vmatpush.xpose.msra.mxu0 0.0
    %280 = vmatpush.xpose.msra.mxu0 %v263
    %281 = vmatmul.f32.gmra.mxu0 %v261
    %v282 = vpop.f32.mrf.mxu0
    %v283 = vadd.f32 0.0, %v282
    %284 = vdwg.mxu0
    %286 = vrot.lane.b32.xlu0 %v232, 80
    %v287 = vpop.permute.xlu0 %286
    %v288 = vsel %vm260, %v232, 0
    %v290 = vsel %vm260, %v287, 0
    %292 = vmatpush.xpose.msra.mxu0 0.0
    %293 = vmatpush.xpose.msra.mxu0 0.0
    %294 = vmatpush.xpose.msra.mxu0 0.0
    %295 = vmatpush.xpose.msra.mxu0 0.0
    %296 = vmatpush.xpose.msra.mxu0 0.0
    %297 = vmatpush.xpose.msra.mxu0 0.0
    %298 = vmatpush.xpose.msra.mxu0 0.0
    %299 = vmatpush.xpose.msra.mxu0 0.0
    %300 = vmatpush.xpose.msra.mxu0 0.0
    %301 = vmatpush.xpose.msra.mxu0 0.0
    %302 = vmatpush.xpose.msra.mxu0 0.0
    %303 = vmatpush.xpose.msra.mxu0 0.0
    %304 = vmatpush.xpose.msra.mxu0 0.0
    %305 = vmatpush.xpose.msra.mxu0 0.0
    %306 = vmatpush.xpose.msra.mxu0 0.0
    %307 = vmatpush.xpose.msra.mxu0 %v290
    %308 = vmatmul.f32.gmra.mxu0 %v288
    %v309 = vpop.f32.mrf.mxu0
    %v310 = vadd.f32 0.0, %v309
    %311 = vdwg.mxu0
    %v312 = vmul.f32 %v283, 0.35355338
    %v313 = vmul.f32 %v310, 0.35355338
    %v314 = vsel %vm260, %v312, -inf
    %315 = vmax.xlane.f32.xlu0 %v314
    %v316 = vpop.xlane.xlu0 %315
    %v317 = vsel %vm260, %v313, -inf
    %318 = vmax.xlane.f32.xlu0 %v317
    %v319 = vpop.xlane.xlu0 %318
    %v320 = vsub.f32 %v312, %v316
    %v321 = vsub.f32 %v313, %v319
    %v322 = vmul.f32 %v320, 1.442695
    %v323 = vpow.pop %v322
    %v324 = vmul.f32 %v321, 1.442695
    %v325 = vpow.pop %v324
    %v326 = vsel %vm260, %v323, 0.0
    %327 = vadd.xlane.f32.xlu0 %v326
    %v328 = vpop.xlane.xlu0 %327
    %v329 = vsel %vm260, %v325, 0.0
    %330 = vadd.xlane.f32.xlu0 %v329
    %v331 = vpop.xlane.xlu0 %330
    %v332 = vrcp.pop %v328
    %v333 = vrcp.pop %v331
    %v334 = vmul.f32 %v323, %v332
    %v335 = vmul.f32 %v325, %v333
    %336 = vrot.lane.b32.xlu0 %v229, 32
    %v337 = vpop.permute.xlu0 %336
    %v340 = vsel %vm260, %v334, 0
    %342 = vmatpush.msra.mxu0 0.0
    %343 = vmatpush.msra.mxu0 0.0
    %344 = vmatpush.msra.mxu0 0.0
    %345 = vmatpush.msra.mxu0 0.0
    %346 = vmatpush.msra.mxu0 0.0
    %347 = vmatpush.msra.mxu0 0.0
    %348 = vmatpush.msra.mxu0 0.0
    %349 = vmatpush.msra.mxu0 0.0
    %350 = vmatpush.msra.mxu0 0.0
    %351 = vmatpush.msra.mxu0 0.0
    %352 = vmatpush.msra.mxu0 0.0
    %353 = vmatpush.msra.mxu0 0.0
    %354 = vmatpush.msra.mxu0 0.0
    %355 = vmatpush.msra.mxu0 0.0
    %356 = vmatpush.msra.mxu0 0.0
    %357 = vmatpush.msra.mxu0 %v337
    %358 = vmatmul.f32.gmra.mxu0 %v340
    %v359 = vpop.f32.mrf.mxu0
    %v360 = vadd.f32 0.0, %v359
    %361 = vdwg.mxu0
    %362 = vrot.lane.b32.xlu0 %v232, 32
    %v363 = vpop.permute.xlu0 %362
    %v366 = vsel %vm260, %v335, 0
    %368 = vmatpush.msra.mxu0 0.0
    %369 = vmatpush.msra.mxu0 0.0
    %370 = vmatpush.msra.mxu0 0.0
    %371 = vmatpush.msra.mxu0 0.0
    %372 = vmatpush.msra.mxu0 0.0
    %373 = vmatpush.msra.mxu0 0.0
    %374 = vmatpush.msra.mxu0 0.0
    %375 = vmatpush.msra.mxu0 0.0
    %376 = vmatpush.msra.mxu0 0.0
    %377 = vmatpush.msra.mxu0 0.0
    %378 = vmatpush.msra.mxu0 0.0
    %379 = vmatpush.msra.mxu0 0.0
    %380 = vmatpush.msra.mxu0 0.0
    %381 = vmatpush.msra.mxu0 0.0
    %382 = vmatpush.msra.mxu0 0.0
    %383 = vmatpush.msra.mxu0 %v363
    %384 = vmatmul.f32.gmra.mxu0 %v366
    %v385 = vpop.f32.mrf.mxu0
    %v386 = vadd.f32 0.0, %v385
    %387 = vdwg.mxu0
    %388 = vrot.lane.b32.xlu0 %v229, 120
    %v389 = vpop.permute.xlu0 %388
    %390 = vrot.lane.b32.xlu0 %v229, 72
    %v391 = vpop.permute.xlu0 %390
    %v392 = vsel %vm260, %v389, 0
    %v394 = vsel %vm260, %v391, 0
    %396 = vmatpush.xpose.msra.mxu0 0.0
    %397 = vmatpush.xpose.msra.mxu0 0.0
    %398 = vmatpush.xpose.msra.mxu0 0.0
    %399 = vmatpush.xpose.msra.mxu0 0.0
    %400 = vmatpush.xpose.msra.mxu0 0.0
    %401 = vmatpush.xpose.msra.mxu0 0.0
    %402 = vmatpush.xpose.msra.mxu0 0.0
    %403 = vmatpush.xpose.msra.mxu0 0.0
    %404 = vmatpush.xpose.msra.mxu0 0.0
    %405 = vmatpush.xpose.msra.mxu0 0.0
    %406 = vmatpush.xpose.msra.mxu0 0.0
    %407 = vmatpush.xpose.msra.mxu0 0.0
    %408 = vmatpush.xpose.msra.mxu0 0.0
    %409 = vmatpush.xpose.msra.mxu0 0.0
    %410 = vmatpush.xpose.msra.mxu0 0.0
    %411 = vmatpush.xpose.msra.mxu0 %v394
    %412 = vmatmul.f32.gmra.mxu0 %v392
    %v413 = vpop.f32.mrf.mxu0
    %v414 = vadd.f32 0.0, %v413
    %415 = vdwg.mxu0
    %416 = vrot.lane.b32.xlu0 %v232, 120
    %v417 = vpop.permute.xlu0 %416
    %418 = vrot.lane.b32.xlu0 %v232, 72
    %v419 = vpop.permute.xlu0 %418
    %v420 = vsel %vm260, %v417, 0
    %v422 = vsel %vm260, %v419, 0
    %424 = vmatpush.xpose.msra.mxu0 0.0
    %425 = vmatpush.xpose.msra.mxu0 0.0
    %426 = vmatpush.xpose.msra.mxu0 0.0
    %427 = vmatpush.xpose.msra.mxu0 0.0
    %428 = vmatpush.xpose.msra.mxu0 0.0
    %429 = vmatpush.xpose.msra.mxu0 0.0
    %430 = vmatpush.xpose.msra.mxu0 0.0
    %431 = vmatpush.xpose.msra.mxu0 0.0
    %432 = vmatpush.xpose.msra.mxu0 0.0
    %433 = vmatpush.xpose.msra.mxu0 0.0
    %434 = vmatpush.xpose.msra.mxu0 0.0
    %435 = vmatpush.xpose.msra.mxu0 0.0
    %436 = vmatpush.xpose.msra.mxu0 0.0
    %437 = vmatpush.xpose.msra.mxu0 0.0
    %438 = vmatpush.xpose.msra.mxu0 0.0
    %439 = vmatpush.xpose.msra.mxu0 %v422
    %440 = vmatmul.f32.gmra.mxu0 %v420
    %v441 = vpop.f32.mrf.mxu0
    %v442 = vadd.f32 0.0, %v441
    %443 = vdwg.mxu0
    %v444 = vmul.f32 %v414, 0.35355338
    %v445 = vmul.f32 %v442, 0.35355338
    %v446 = vsel %vm260, %v444, -inf
    %447 = vmax.xlane.f32.xlu0 %v446
    %v448 = vpop.xlane.xlu0 %447
    %v449 = vsel %vm260, %v445, -inf
    %450 = vmax.xlane.f32.xlu0 %v449
    %v451 = vpop.xlane.xlu0 %450
    %v452 = vsub.f32 %v444, %v448
    %v453 = vsub.f32 %v445, %v451
    %v454 = vmul.f32 %v452, 1.442695
    %v455 = vpow.pop %v454
    %v456 = vmul.f32 %v453, 1.442695
    %v457 = vpow.pop %v456
    %v458 = vsel %vm260, %v455, 0.0
    %459 = vadd.xlane.f32.xlu0 %v458
    %v460 = vpop.xlane.xlu0 %459
    %v461 = vsel %vm260, %v457, 0.0
    %462 = vadd.xlane.f32.xlu0 %v461
    %v463 = vpop.xlane.xlu0 %462
    %v464 = vrcp.pop %v460
    %v465 = vrcp.pop %v463
    %v466 = vmul.f32 %v455, %v464
    %v467 = vmul.f32 %v457, %v465
    %468 = vrot.lane.b32.xlu0 %v229, 24
    %v469 = vpop.permute.xlu0 %468
    %v472 = vsel %vm260, %v466, 0
    %474 = vmatpush.msra.mxu0 0.0
    %475 = vmatpush.msra.mxu0 0.0
    %476 = vmatpush.msra.mxu0 0.0
    %477 = vmatpush.msra.mxu0 0.0
    %478 = vmatpush.msra.mxu0 0.0
    %479 = vmatpush.msra.mxu0 0.0
    %480 = vmatpush.msra.mxu0 0.0
    %481 = vmatpush.msra.mxu0 0.0
    %482 = vmatpush.msra.mxu0 0.0
    %483 = vmatpush.msra.mxu0 0.0
    %484 = vmatpush.msra.mxu0 0.0
    %485 = vmatpush.msra.mxu0 0.0
    %486 = vmatpush.msra.mxu0 0.0
    %487 = vmatpush.msra.mxu0 0.0
    %488 = vmatpush.msra.mxu0 0.0
    %489 = vmatpush.msra.mxu0 %v469
    %490 = vmatmul.f32.gmra.mxu0 %v472
    %v491 = vpop.f32.mrf.mxu0
    %v492 = vadd.f32 0.0, %v491
    %493 = vdwg.mxu0
    %494 = vrot.lane.b32.xlu0 %v232, 24
    %v495 = vpop.permute.xlu0 %494
    %v498 = vsel %vm260, %v467, 0
    %500 = vmatpush.msra.mxu0 0.0
    %501 = vmatpush.msra.mxu0 0.0
    %502 = vmatpush.msra.mxu0 0.0
    %503 = vmatpush.msra.mxu0 0.0
    %504 = vmatpush.msra.mxu0 0.0
    %505 = vmatpush.msra.mxu0 0.0
    %506 = vmatpush.msra.mxu0 0.0
    %507 = vmatpush.msra.mxu0 0.0
    %508 = vmatpush.msra.mxu0 0.0
    %509 = vmatpush.msra.mxu0 0.0
    %510 = vmatpush.msra.mxu0 0.0
    %511 = vmatpush.msra.mxu0 0.0
    %512 = vmatpush.msra.mxu0 0.0
    %513 = vmatpush.msra.mxu0 0.0
    %514 = vmatpush.msra.mxu0 0.0
    %515 = vmatpush.msra.mxu0 %v495
    %516 = vmatmul.f32.gmra.mxu0 %v498
    %v517 = vpop.f32.mrf.mxu0
    %v518 = vadd.f32 0.0, %v517
    %519 = vdwg.mxu0
    %520 = vrot.lane.b32.xlu0 %v229, 112
    %v521 = vpop.permute.xlu0 %520
    %522 = vrot.lane.b32.xlu0 %v229, 64
    %v523 = vpop.permute.xlu0 %522
    %v524 = vsel %vm260, %v521, 0
    %v526 = vsel %vm260, %v523, 0
    %528 = vmatpush.xpose.msra.mxu0 0.0
    %529 = vmatpush.xpose.msra.mxu0 0.0
    %530 = vmatpush.xpose.msra.mxu0 0.0
    %531 = vmatpush.xpose.msra.mxu0 0.0
    %532 = vmatpush.xpose.msra.mxu0 0.0
    %533 = vmatpush.xpose.msra.mxu0 0.0
    %534 = vmatpush.xpose.msra.mxu0 0.0
    %535 = vmatpush.xpose.msra.mxu0 0.0
    %536 = vmatpush.xpose.msra.mxu0 0.0
    %537 = vmatpush.xpose.msra.mxu0 0.0
    %538 = vmatpush.xpose.msra.mxu0 0.0
    %539 = vmatpush.xpose.msra.mxu0 0.0
    %540 = vmatpush.xpose.msra.mxu0 0.0
    %541 = vmatpush.xpose.msra.mxu0 0.0
    %542 = vmatpush.xpose.msra.mxu0 0.0
    %543 = vmatpush.xpose.msra.mxu0 %v526
    %544 = vmatmul.f32.gmra.mxu0 %v524
    %v545 = vpop.f32.mrf.mxu0
    %v546 = vadd.f32 0.0, %v545
    %547 = vdwg.mxu0
    %548 = vrot.lane.b32.xlu0 %v232, 112
    %v549 = vpop.permute.xlu0 %548
    %550 = vrot.lane.b32.xlu0 %v232, 64
    %v551 = vpop.permute.xlu0 %550
    %v552 = vsel %vm260, %v549, 0
    %v554 = vsel %vm260, %v551, 0
    %556 = vmatpush.xpose.msra.mxu0 0.0
    %557 = vmatpush.xpose.msra.mxu0 0.0
    %558 = vmatpush.xpose.msra.mxu0 0.0
    %559 = vmatpush.xpose.msra.mxu0 0.0
    %560 = vmatpush.xpose.msra.mxu0 0.0
    %561 = vmatpush.xpose.msra.mxu0 0.0
    %562 = vmatpush.xpose.msra.mxu0 0.0
    %563 = vmatpush.xpose.msra.mxu0 0.0
    %564 = vmatpush.xpose.msra.mxu0 0.0
    %565 = vmatpush.xpose.msra.mxu0 0.0
    %566 = vmatpush.xpose.msra.mxu0 0.0
    %567 = vmatpush.xpose.msra.mxu0 0.0
    %568 = vmatpush.xpose.msra.mxu0 0.0
    %569 = vmatpush.xpose.msra.mxu0 0.0
    %570 = vmatpush.xpose.msra.mxu0 0.0
    %571 = vmatpush.xpose.msra.mxu0 %v554
    %572 = vmatmul.f32.gmra.mxu0 %v552
    %v573 = vpop.f32.mrf.mxu0
    %v574 = vadd.f32 0.0, %v573
    %575 = vdwg.mxu0
    %v576 = vmul.f32 %v546, 0.35355338
    %v577 = vmul.f32 %v574, 0.35355338
    %v578 = vsel %vm260, %v576, -inf
    %579 = vmax.xlane.f32.xlu0 %v578
    %v580 = vpop.xlane.xlu0 %579
    %v581 = vsel %vm260, %v577, -inf
    %582 = vmax.xlane.f32.xlu0 %v581
    %v583 = vpop.xlane.xlu0 %582
    %v584 = vsub.f32 %v576, %v580
    %v585 = vsub.f32 %v577, %v583
    %v586 = vmul.f32 %v584, 1.442695
    %v587 = vpow.pop %v586
    %v588 = vmul.f32 %v585, 1.442695
    %v589 = vpow.pop %v588
    %v590 = vsel %vm260, %v587, 0.0
    %591 = vadd.xlane.f32.xlu0 %v590
    %v592 = vpop.xlane.xlu0 %591
    %v593 = vsel %vm260, %v589, 0.0
    %594 = vadd.xlane.f32.xlu0 %v593
    %v595 = vpop.xlane.xlu0 %594
    %v596 = vrcp.pop %v592
    %v597 = vrcp.pop %v595
    %v598 = vmul.f32 %v587, %v596
    %v599 = vmul.f32 %v589, %v597
    %600 = vrot.lane.b32.xlu0 %v229, 16
    %v601 = vpop.permute.xlu0 %600
    %v604 = vsel %vm260, %v598, 0
    %606 = vmatpush.msra.mxu0 0.0
    %607 = vmatpush.msra.mxu0 0.0
    %608 = vmatpush.msra.mxu0 0.0
    %609 = vmatpush.msra.mxu0 0.0
    %610 = vmatpush.msra.mxu0 0.0
    %611 = vmatpush.msra.mxu0 0.0
    %612 = vmatpush.msra.mxu0 0.0
    %613 = vmatpush.msra.mxu0 0.0
    %614 = vmatpush.msra.mxu0 0.0
    %615 = vmatpush.msra.mxu0 0.0
    %616 = vmatpush.msra.mxu0 0.0
    %617 = vmatpush.msra.mxu0 0.0
    %618 = vmatpush.msra.mxu0 0.0
    %619 = vmatpush.msra.mxu0 0.0
    %620 = vmatpush.msra.mxu0 0.0
    %621 = vmatpush.msra.mxu0 %v601
    %622 = vmatmul.f32.gmra.mxu0 %v604
    %v623 = vpop.f32.mrf.mxu0
    %v624 = vadd.f32 0.0, %v623
    %625 = vdwg.mxu0
    %626 = vrot.lane.b32.xlu0 %v232, 16
    %v627 = vpop.permute.xlu0 %626
    %v630 = vsel %vm260, %v599, 0
    %632 = vmatpush.msra.mxu0 0.0
    %633 = vmatpush.msra.mxu0 0.0
    %634 = vmatpush.msra.mxu0 0.0
    %635 = vmatpush.msra.mxu0 0.0
    %636 = vmatpush.msra.mxu0 0.0
    %637 = vmatpush.msra.mxu0 0.0
    %638 = vmatpush.msra.mxu0 0.0
    %639 = vmatpush.msra.mxu0 0.0
    %640 = vmatpush.msra.mxu0 0.0
    %641 = vmatpush.msra.mxu0 0.0
    %642 = vmatpush.msra.mxu0 0.0
    %643 = vmatpush.msra.mxu0 0.0
    %644 = vmatpush.msra.mxu0 0.0
    %645 = vmatpush.msra.mxu0 0.0
    %646 = vmatpush.msra.mxu0 0.0
    %647 = vmatpush.msra.mxu0 %v627
    %648 = vmatmul.f32.gmra.mxu0 %v630
    %v649 = vpop.f32.mrf.mxu0
    %v650 = vadd.f32 0.0, %v649
    %651 = vdwg.mxu0
    %652 = vrot.lane.b32.xlu0 %v229, 104
    %v653 = vpop.permute.xlu0 %652
    %654 = vrot.lane.b32.xlu0 %v229, 56
    %v655 = vpop.permute.xlu0 %654
    %v656 = vsel %vm260, %v653, 0
    %v658 = vsel %vm260, %v655, 0
    %660 = vmatpush.xpose.msra.mxu0 0.0
    %661 = vmatpush.xpose.msra.mxu0 0.0
    %662 = vmatpush.xpose.msra.mxu0 0.0
    %663 = vmatpush.xpose.msra.mxu0 0.0
    %664 = vmatpush.xpose.msra.mxu0 0.0
    %665 = vmatpush.xpose.msra.mxu0 0.0
    %666 = vmatpush.xpose.msra.mxu0 0.0
    %667 = vmatpush.xpose.msra.mxu0 0.0
    %668 = vmatpush.xpose.msra.mxu0 0.0
    %669 = vmatpush.xpose.msra.mxu0 0.0
    %670 = vmatpush.xpose.msra.mxu0 0.0
    %671 = vmatpush.xpose.msra.mxu0 0.0
    %672 = vmatpush.xpose.msra.mxu0 0.0
    %673 = vmatpush.xpose.msra.mxu0 0.0
    %674 = vmatpush.xpose.msra.mxu0 0.0
    %675 = vmatpush.xpose.msra.mxu0 %v658
    %676 = vmatmul.f32.gmra.mxu0 %v656
    %v677 = vpop.f32.mrf.mxu0
    %v678 = vadd.f32 0.0, %v677
    %679 = vdwg.mxu0
    %680 = vrot.lane.b32.xlu0 %v232, 104
    %v681 = vpop.permute.xlu0 %680
    %682 = vrot.lane.b32.xlu0 %v232, 56
    %v683 = vpop.permute.xlu0 %682
    %v684 = vsel %vm260, %v681, 0
    %v686 = vsel %vm260, %v683, 0
    %688 = vmatpush.xpose.msra.mxu0 0.0
    %689 = vmatpush.xpose.msra.mxu0 0.0
    %690 = vmatpush.xpose.msra.mxu0 0.0
    %691 = vmatpush.xpose.msra.mxu0 0.0
    %692 = vmatpush.xpose.msra.mxu0 0.0
    %693 = vmatpush.xpose.msra.mxu0 0.0
    %694 = vmatpush.xpose.msra.mxu0 0.0
    %695 = vmatpush.xpose.msra.mxu0 0.0
    %696 = vmatpush.xpose.msra.mxu0 0.0
    %697 = vmatpush.xpose.msra.mxu0 0.0
    %698 = vmatpush.xpose.msra.mxu0 0.0
    %699 = vmatpush.xpose.msra.mxu0 0.0
    %700 = vmatpush.xpose.msra.mxu0 0.0
    %701 = vmatpush.xpose.msra.mxu0 0.0
    %702 = vmatpush.xpose.msra.mxu0 0.0
    %703 = vmatpush.xpose.msra.mxu0 %v686
    %704 = vmatmul.f32.gmra.mxu0 %v684
    %v705 = vpop.f32.mrf.mxu0
    %v706 = vadd.f32 0.0, %v705
    %707 = vdwg.mxu0
    %v708 = vmul.f32 %v678, 0.35355338
    %v709 = vmul.f32 %v706, 0.35355338
    %v710 = vsel %vm260, %v708, -inf
    %711 = vmax.xlane.f32.xlu0 %v710
    %v712 = vpop.xlane.xlu0 %711
    %v713 = vsel %vm260, %v709, -inf
    %714 = vmax.xlane.f32.xlu0 %v713
    %v715 = vpop.xlane.xlu0 %714
    %v716 = vsub.f32 %v708, %v712
    %v717 = vsub.f32 %v709, %v715
    %v718 = vmul.f32 %v716, 1.442695
    %v719 = vpow.pop %v718
    %v720 = vmul.f32 %v717, 1.442695
    %v721 = vpow.pop %v720
    %v722 = vsel %vm260, %v719, 0.0
    %723 = vadd.xlane.f32.xlu0 %v722
    %v724 = vpop.xlane.xlu0 %723
    %v725 = vsel %vm260, %v721, 0.0
    %726 = vadd.xlane.f32.xlu0 %v725
    %v727 = vpop.xlane.xlu0 %726
    %v728 = vrcp.pop %v724
    %v729 = vrcp.pop %v727
    %v730 = vmul.f32 %v719, %v728
    %v731 = vmul.f32 %v721, %v729
    %732 = vrot.lane.b32.xlu0 %v229, 8
    %v733 = vpop.permute.xlu0 %732
    %v736 = vsel %vm260, %v730, 0
    %738 = vmatpush.msra.mxu0 0.0
    %739 = vmatpush.msra.mxu0 0.0
    %740 = vmatpush.msra.mxu0 0.0
    %741 = vmatpush.msra.mxu0 0.0
    %742 = vmatpush.msra.mxu0 0.0
    %743 = vmatpush.msra.mxu0 0.0
    %744 = vmatpush.msra.mxu0 0.0
    %745 = vmatpush.msra.mxu0 0.0
    %746 = vmatpush.msra.mxu0 0.0
    %747 = vmatpush.msra.mxu0 0.0
    %748 = vmatpush.msra.mxu0 0.0
    %749 = vmatpush.msra.mxu0 0.0
    %750 = vmatpush.msra.mxu0 0.0
    %751 = vmatpush.msra.mxu0 0.0
    %752 = vmatpush.msra.mxu0 0.0
    %753 = vmatpush.msra.mxu0 %v733
    %754 = vmatmul.f32.gmra.mxu0 %v736
    %v755 = vpop.f32.mrf.mxu0
    %v756 = vadd.f32 0.0, %v755
    %757 = vdwg.mxu0
    %758 = vrot.lane.b32.xlu0 %v232, 8
    %v759 = vpop.permute.xlu0 %758
    %v762 = vsel %vm260, %v731, 0
    %764 = vmatpush.msra.mxu0 0.0
    %765 = vmatpush.msra.mxu0 0.0
    %766 = vmatpush.msra.mxu0 0.0
    %767 = vmatpush.msra.mxu0 0.0
    %768 = vmatpush.msra.mxu0 0.0
    %769 = vmatpush.msra.mxu0 0.0
    %770 = vmatpush.msra.mxu0 0.0
    %771 = vmatpush.msra.mxu0 0.0
    %772 = vmatpush.msra.mxu0 0.0
    %773 = vmatpush.msra.mxu0 0.0
    %774 = vmatpush.msra.mxu0 0.0
    %775 = vmatpush.msra.mxu0 0.0
    %776 = vmatpush.msra.mxu0 0.0
    %777 = vmatpush.msra.mxu0 0.0
    %778 = vmatpush.msra.mxu0 0.0
    %779 = vmatpush.msra.mxu0 %v759
    %780 = vmatmul.f32.gmra.mxu0 %v762
    %v781 = vpop.f32.mrf.mxu0
    %v782 = vadd.f32 0.0, %v781
    %783 = vdwg.mxu0
    %784 = vrot.lane.b32.xlu0 %v229, 96
    %v785 = vpop.permute.xlu0 %784
    %786 = vrot.lane.b32.xlu0 %v229, 48
    %v787 = vpop.permute.xlu0 %786
    %v788 = vsel %vm260, %v785, 0
    %v790 = vsel %vm260, %v787, 0
    %792 = vmatpush.xpose.msra.mxu0 0.0
    %793 = vmatpush.xpose.msra.mxu0 0.0
    %794 = vmatpush.xpose.msra.mxu0 0.0
    %795 = vmatpush.xpose.msra.mxu0 0.0
    %796 = vmatpush.xpose.msra.mxu0 0.0
    %797 = vmatpush.xpose.msra.mxu0 0.0
    %798 = vmatpush.xpose.msra.mxu0 0.0
    %799 = vmatpush.xpose.msra.mxu0 0.0
    %800 = vmatpush.xpose.msra.mxu0 0.0
    %801 = vmatpush.xpose.msra.mxu0 0.0
    %802 = vmatpush.xpose.msra.mxu0 0.0
    %803 = vmatpush.xpose.msra.mxu0 0.0
    %804 = vmatpush.xpose.msra.mxu0 0.0
    %805 = vmatpush.xpose.msra.mxu0 0.0
    %806 = vmatpush.xpose.msra.mxu0 0.0
    %807 = vmatpush.xpose.msra.mxu0 %v790
    %808 = vmatmul.f32.gmra.mxu0 %v788
    %v809 = vpop.f32.mrf.mxu0
    %v810 = vadd.f32 0.0, %v809
    %811 = vdwg.mxu0
    %812 = vrot.lane.b32.xlu0 %v232, 96
    %v813 = vpop.permute.xlu0 %812
    %814 = vrot.lane.b32.xlu0 %v232, 48
    %v815 = vpop.permute.xlu0 %814
    %v816 = vsel %vm260, %v813, 0
    %v818 = vsel %vm260, %v815, 0
    %820 = vmatpush.xpose.msra.mxu0 0.0
    %821 = vmatpush.xpose.msra.mxu0 0.0
    %822 = vmatpush.xpose.msra.mxu0 0.0
    %823 = vmatpush.xpose.msra.mxu0 0.0
    %824 = vmatpush.xpose.msra.mxu0 0.0
    %825 = vmatpush.xpose.msra.mxu0 0.0
    %826 = vmatpush.xpose.msra.mxu0 0.0
    %827 = vmatpush.xpose.msra.mxu0 0.0
    %828 = vmatpush.xpose.msra.mxu0 0.0
    %829 = vmatpush.xpose.msra.mxu0 0.0
    %830 = vmatpush.xpose.msra.mxu0 0.0
    %831 = vmatpush.xpose.msra.mxu0 0.0
    %832 = vmatpush.xpose.msra.mxu0 0.0
    %833 = vmatpush.xpose.msra.mxu0 0.0
    %834 = vmatpush.xpose.msra.mxu0 0.0
    %835 = vmatpush.xpose.msra.mxu0 %v818
    %836 = vmatmul.f32.gmra.mxu0 %v816
    %v837 = vpop.f32.mrf.mxu0
    %v838 = vadd.f32 0.0, %v837
    %839 = vdwg.mxu0
    %v840 = vmul.f32 %v810, 0.35355338
    %v841 = vmul.f32 %v838, 0.35355338
    %v842 = vsel %vm260, %v840, -inf
    %843 = vmax.xlane.f32.xlu0 %v842
    %v844 = vpop.xlane.xlu0 %843
    %v845 = vsel %vm260, %v841, -inf
    %846 = vmax.xlane.f32.xlu0 %v845
    %v847 = vpop.xlane.xlu0 %846
    %v848 = vsub.f32 %v840, %v844
    %v849 = vsub.f32 %v841, %v847
    %v850 = vmul.f32 %v848, 1.442695
    %v851 = vpow.pop %v850
    %v852 = vmul.f32 %v849, 1.442695
    %v853 = vpow.pop %v852
    %v854 = vsel %vm260, %v851, 0.0
    %855 = vadd.xlane.f32.xlu0 %v854
    %v856 = vpop.xlane.xlu0 %855
    %v857 = vsel %vm260, %v853, 0.0
    %858 = vadd.xlane.f32.xlu0 %v857
    %v859 = vpop.xlane.xlu0 %858
    %v860 = vrcp.pop %v856
    %v861 = vrcp.pop %v859
    %v862 = vmul.f32 %v851, %v860
    %v863 = vmul.f32 %v853, %v861
    %v865 = vsel %vm260, %v862, 0
    %867 = vmatpush.msra.mxu0 0.0
    %868 = vmatpush.msra.mxu0 0.0
    %869 = vmatpush.msra.mxu0 0.0
    %870 = vmatpush.msra.mxu0 0.0
    %871 = vmatpush.msra.mxu0 0.0
    %872 = vmatpush.msra.mxu0 0.0
    %873 = vmatpush.msra.mxu0 0.0
    %874 = vmatpush.msra.mxu0 0.0
    %875 = vmatpush.msra.mxu0 0.0
    %876 = vmatpush.msra.mxu0 0.0
    %877 = vmatpush.msra.mxu0 0.0
    %878 = vmatpush.msra.mxu0 0.0
    %879 = vmatpush.msra.mxu0 0.0
    %880 = vmatpush.msra.mxu0 0.0
    %881 = vmatpush.msra.mxu0 0.0
    %882 = vmatpush.msra.mxu0 %v252
    %883 = vmatmul.f32.gmra.mxu0 %v865
    %v884 = vpop.f32.mrf.mxu0
    %v885 = vadd.f32 0.0, %v884
    %886 = vdwg.mxu0
    %v888 = vsel %vm260, %v863, 0
    %890 = vmatpush.msra.mxu0 0.0
    %891 = vmatpush.msra.mxu0 0.0
    %892 = vmatpush.msra.mxu0 0.0
    %893 = vmatpush.msra.mxu0 0.0
    %894 = vmatpush.msra.mxu0 0.0
    %895 = vmatpush.msra.mxu0 0.0
    %896 = vmatpush.msra.mxu0 0.0
    %897 = vmatpush.msra.mxu0 0.0
    %898 = vmatpush.msra.mxu0 0.0
    %899 = vmatpush.msra.mxu0 0.0
    %900 = vmatpush.msra.mxu0 0.0
    %901 = vmatpush.msra.mxu0 0.0
    %902 = vmatpush.msra.mxu0 0.0
    %903 = vmatpush.msra.mxu0 0.0
    %904 = vmatpush.msra.mxu0 0.0
    %905 = vmatpush.msra.mxu0 %v255
    %906 = vmatmul.f32.gmra.mxu0 %v888
    %v907 = vpop.f32.mrf.mxu0
    %v908 = vadd.f32 0.0, %v907
    %909 = vdwg.mxu0
    %910 = vrot.lane.b32.xlu0 %v229, 88
    %v911 = vpop.permute.xlu0 %910
    %912 = vrot.lane.b32.xlu0 %v229, 40
    %v913 = vpop.permute.xlu0 %912
    %v914 = vsel %vm260, %v911, 0
    %v916 = vsel %vm260, %v913, 0
    %918 = vmatpush.xpose.msra.mxu0 0.0
    %919 = vmatpush.xpose.msra.mxu0 0.0
    %920 = vmatpush.xpose.msra.mxu0 0.0
    %921 = vmatpush.xpose.msra.mxu0 0.0
    %922 = vmatpush.xpose.msra.mxu0 0.0
    %923 = vmatpush.xpose.msra.mxu0 0.0
    %924 = vmatpush.xpose.msra.mxu0 0.0
    %925 = vmatpush.xpose.msra.mxu0 0.0
    %926 = vmatpush.xpose.msra.mxu0 0.0
    %927 = vmatpush.xpose.msra.mxu0 0.0
    %928 = vmatpush.xpose.msra.mxu0 0.0
    %929 = vmatpush.xpose.msra.mxu0 0.0
    %930 = vmatpush.xpose.msra.mxu0 0.0
    %931 = vmatpush.xpose.msra.mxu0 0.0
    %932 = vmatpush.xpose.msra.mxu0 0.0
    %933 = vmatpush.xpose.msra.mxu0 %v916
    %934 = vmatmul.f32.gmra.mxu0 %v914
    %v935 = vpop.f32.mrf.mxu0
    %v936 = vadd.f32 0.0, %v935
    %937 = vdwg.mxu0
    %938 = vrot.lane.b32.xlu0 %v232, 88
    %v939 = vpop.permute.xlu0 %938
    %940 = vrot.lane.b32.xlu0 %v232, 40
    %v941 = vpop.permute.xlu0 %940
    %v942 = vsel %vm260, %v939, 0
    %v944 = vsel %vm260, %v941, 0
    %946 = vmatpush.xpose.msra.mxu0 0.0
    %947 = vmatpush.xpose.msra.mxu0 0.0
    %948 = vmatpush.xpose.msra.mxu0 0.0
    %949 = vmatpush.xpose.msra.mxu0 0.0
    %950 = vmatpush.xpose.msra.mxu0 0.0
    %951 = vmatpush.xpose.msra.mxu0 0.0
    %952 = vmatpush.xpose.msra.mxu0 0.0
    %953 = vmatpush.xpose.msra.mxu0 0.0
    %954 = vmatpush.xpose.msra.mxu0 0.0
    %955 = vmatpush.xpose.msra.mxu0 0.0
    %956 = vmatpush.xpose.msra.mxu0 0.0
    %957 = vmatpush.xpose.msra.mxu0 0.0
    %958 = vmatpush.xpose.msra.mxu0 0.0
    %959 = vmatpush.xpose.msra.mxu0 0.0
    %960 = vmatpush.xpose.msra.mxu0 0.0
    %961 = vmatpush.xpose.msra.mxu0 %v944
    %962 = vmatmul.f32.gmra.mxu0 %v942
    %v963 = vpop.f32.mrf.mxu0
    %v964 = vadd.f32 0.0, %v963
    %965 = vdwg.mxu0
    %v966 = vmul.f32 %v936, 0.35355338
    %v967 = vmul.f32 %v964, 0.35355338
    %v968 = vsel %vm260, %v966, -inf
    %969 = vmax.xlane.f32.xlu0 %v968
    %v970 = vpop.xlane.xlu0 %969
    %v971 = vsel %vm260, %v967, -inf
    %972 = vmax.xlane.f32.xlu0 %v971
    %v973 = vpop.xlane.xlu0 %972
    %v974 = vsub.f32 %v966, %v970
    %v975 = vsub.f32 %v967, %v973
    %v976 = vmul.f32 %v974, 1.442695
    %v977 = vpow.pop %v976
    %v978 = vmul.f32 %v975, 1.442695
    %v979 = vpow.pop %v978
    %v980 = vsel %vm260, %v977, 0.0
    %981 = vadd.xlane.f32.xlu0 %v980
    %v982 = vpop.xlane.xlu0 %981
    %v983 = vsel %vm260, %v979, 0.0
    %984 = vadd.xlane.f32.xlu0 %v983
    %v985 = vpop.xlane.xlu0 %984
    %v986 = vrcp.pop %v982
    %v987 = vrcp.pop %v985
    %v988 = vmul.f32 %v977, %v986
    %v989 = vmul.f32 %v979, %v987
    %991 = vrot.lane.b32.xlu0 %v252, 120
    %v992 = vpop.permute.xlu0 %991
    %v995 = vsel %vm260, %v988, 0
    %997 = vmatpush.msra.mxu0 0.0
    %998 = vmatpush.msra.mxu0 0.0
    %999 = vmatpush.msra.mxu0 0.0
    %1000 = vmatpush.msra.mxu0 0.0
    %1001 = vmatpush.msra.mxu0 0.0
    %1002 = vmatpush.msra.mxu0 0.0
    %1003 = vmatpush.msra.mxu0 0.0
    %1004 = vmatpush.msra.mxu0 0.0
    %1005 = vmatpush.msra.mxu0 0.0
    %1006 = vmatpush.msra.mxu0 0.0
    %1007 = vmatpush.msra.mxu0 0.0
    %1008 = vmatpush.msra.mxu0 0.0
    %1009 = vmatpush.msra.mxu0 0.0
    %1010 = vmatpush.msra.mxu0 0.0
    %1011 = vmatpush.msra.mxu0 0.0
    %1012 = vmatpush.msra.mxu0 %v992
    %1013 = vmatmul.f32.gmra.mxu0 %v995
    %v1014 = vpop.f32.mrf.mxu0
    %v1015 = vadd.f32 0.0, %v1014
    %1016 = vdwg.mxu0
    %1018 = vrot.lane.b32.xlu0 %v255, 120
    %v1019 = vpop.permute.xlu0 %1018
    %v1022 = vsel %vm260, %v989, 0
    %1024 = vmatpush.msra.mxu0 0.0
    %1025 = vmatpush.msra.mxu0 0.0
    %1026 = vmatpush.msra.mxu0 0.0
    %1027 = vmatpush.msra.mxu0 0.0
    %1028 = vmatpush.msra.mxu0 0.0
    %1029 = vmatpush.msra.mxu0 0.0
    %1030 = vmatpush.msra.mxu0 0.0
    %1031 = vmatpush.msra.mxu0 0.0
    %1032 = vmatpush.msra.mxu0 0.0
    %1033 = vmatpush.msra.mxu0 0.0
    %1034 = vmatpush.msra.mxu0 0.0
    %1035 = vmatpush.msra.mxu0 0.0
    %1036 = vmatpush.msra.mxu0 0.0
    %1037 = vmatpush.msra.mxu0 0.0
    %1038 = vmatpush.msra.mxu0 0.0
    %1039 = vmatpush.msra.mxu0 %v1019
    %1040 = vmatmul.f32.gmra.mxu0 %v1022
    %v1041 = vpop.f32.mrf.mxu0
    %v1042 = vadd.f32 0.0, %v1041
    %1043 = vdwg.mxu0
    %1046 = vrot.lane.b32.xlu0 %v492, 8
    %v1047 = vpop.permute.xlu0 %1046
    %1048 = vrot.lane.b32.xlu0 %v518, 8
    %v1049 = vpop.permute.xlu0 %1048
    %1054 = vrot.lane.b32.xlu0 %v624, 16
    %v1055 = vpop.permute.xlu0 %1054
    %1056 = vrot.lane.b32.xlu0 %v650, 16
    %v1057 = vpop.permute.xlu0 %1056
    %1062 = vrot.lane.b32.xlu0 %v756, 24
    %v1063 = vpop.permute.xlu0 %1062
    %1064 = vrot.lane.b32.xlu0 %v782, 24
    %v1065 = vpop.permute.xlu0 %1064
    %1070 = vrot.lane.b32.xlu0 %v885, 32
    %v1071 = vpop.permute.xlu0 %1070
    %1072 = vrot.lane.b32.xlu0 %v908, 32
    %v1073 = vpop.permute.xlu0 %1072
    %1078 = vrot.lane.b32.xlu0 %v1015, 40
    %v1079 = vpop.permute.xlu0 %1078
    %1080 = vrot.lane.b32.xlu0 %v1042, 40
    %v1081 = vpop.permute.xlu0 %1080
    %v1084 = vsel %vm260, %v360, %v1047
    %v1085 = vsel %vm260, %v386, %v1049
    %vm1086 = vcmask 130048
    %v1087 = vsel %vm1086, %v1084, %v1055
    %v1088 = vsel %vm1086, %v1085, %v1057
    %vm1089 = vcmask 195584
    %v1090 = vsel %vm1089, %v1087, %v1063
    %v1091 = vsel %vm1089, %v1088, %v1065
    %v1092 = vsel %vm100, %v1090, %v1071
    %v1093 = vsel %vm100, %v1091, %v1073
    %vm1094 = vcmask 326656
    %v1095 = vsel %vm1094, %v1092, %v1079
    %v1096 = vsel %vm1094, %v1093, %v1081
    %v1097 = vadd.f32 %v1095, %v187
    %v1098 = vadd.f32 %v1096, %v190
    %v1099 = vsel %vm204, %v1097, 0.0
    %1100 = vadd.xlane.f32.xlu0 %v1099
    %v1101 = vpop.xlane.xlu0 %1100
    %v1102 = vsel %vm204, %v1098, 0.0
    %1103 = vadd.xlane.f32.xlu0 %v1102
    %v1104 = vpop.xlane.xlu0 %1103
    %v1105 = vrcp.pop 48.0
    %v1106 = vmul.f32 48.0, %v1105
    %v1107 = vsub.f32 1.0, %v1106
    %v1108 = vmul.f32 %v1105, %v1107
    %v1109 = vadd.f32 %v1105, %v1108
    %vm1110 = vweird.f32 %v1105
    %v1111 = vsel %vm1110, %v1105, %v1109
    %v1112 = vmul.f32 %v1101, %v1111
    %v1113 = vmul.f32 %v1104, %v1111
    %v1114 = vsub.f32 %v1097, %v1112
    %v1115 = vsub.f32 %v1098, %v1113
    %v1116 = vmul.f32 %v1114, %v1114
    %v1117 = vmul.f32 %v1115, %v1115
    %v1118 = vsel %vm204, %v1116, 0.0
    %1119 = vadd.xlane.f32.xlu0 %v1118
    %v1120 = vpop.xlane.xlu0 %1119
    %v1121 = vsel %vm204, %v1117, 0.0
    %1122 = vadd.xlane.f32.xlu0 %v1121
    %v1123 = vpop.xlane.xlu0 %1122
    %v1124 = vmul.f32 %v1120, %v1111
    %v1125 = vmul.f32 %v1123, %v1111
    %v1126 = vadd.f32 %v1124, 1e-05
    %v1127 = vadd.f32 %v1125, 1e-05
    %v1128 = vrsqrt.pop %v1126
    %v1129 = vmul.f32 %v1128, %v1126
    %v1130 = vmul.f32 %v1129, %v1128
    %v1131 = vmul.f32 0.5, %v1130
    %v1132 = vsub.f32 1.5, %v1131
    %v1133 = vmul.f32 %v1128, %v1132
    %vm1134 = vweird.f32 %v1126
    %vm1135 = vweird.f32 %v1128
    %vm1136 = vmor %vm1134, %vm1135
    %v1137 = vsel %vm1136, %v1128, %v1133
    %v1138 = vrsqrt.pop %v1127
    %v1139 = vmul.f32 %v1138, %v1127
    %v1140 = vmul.f32 %v1139, %v1138
    %v1141 = vmul.f32 0.5, %v1140
    %v1142 = vsub.f32 1.5, %v1141
    %v1143 = vmul.f32 %v1138, %v1142
    %vm1144 = vweird.f32 %v1127
    %vm1145 = vweird.f32 %v1138
    %vm1146 = vmor %vm1144, %vm1145
    %v1147 = vsel %vm1146, %v1138, %v1143
    %v1148 = vmul.f32 %v1114, %v1137
    %v1149 = vmul.f32 %v1115, %v1147
    %v1150 = vperm.slane %v99, 3
    %v1151 = vmul.f32 %v1148, %v1150
    %v1152 = vmul.f32 %v1149, %v1150
    %v1153 = vperm.slane %v99, 4
    %v1154 = vadd.f32 %v1151, %v1153
    %v1155 = vadd.f32 %v1152, %v1153
    %s1156 = scalar_lea.vmem [#allocation8], 96
    %v1157 = vld [vmem:[%s1156] sm:$0xff]
    %v1158 = vld [vmem:[%s1156 + $0x8] sm:$0xff]
    %v1159 = vld [vmem:[%s1156 + $0x10] sm:$0xff]
    %v1160 = vld [vmem:[%s1156 + $0x18] sm:$0xff]
    %v1161 = vld [vmem:[%s1156 + $0x20] sm:$0xff]
    %v1162 = vld [vmem:[%s1156 + $0x28] sm:$0xff]
    %v1163 = vld [vmem:[%s1156 + $0x30] sm:$0xff]
    %v1164 = vld [vmem:[%s1156 + $0x38] sm:$0xff]
    %v1165 = vld [vmem:[%s1156 + $0x40] sm:$0xff]
    %v1166 = vld [vmem:[%s1156 + $0x48] sm:$0xff]
    %v1167 = vld [vmem:[%s1156 + $0x50] sm:$0xff]
    %v1168 = vld [vmem:[%s1156 + $0x58] sm:$0xff]
    %v1170 = vsel %vm204, %v1154, 0
    %v1173 = vsel %vm204, %v1155, 0
    %1175 = vmatpush.msra.mxu0 0.0
    %1176 = vmatpush.msra.mxu0 0.0
    %1177 = vmatpush.msra.mxu0 0.0
    %1178 = vmatpush.msra.mxu0 0.0
    %1179 = vmatpush.msra.mxu0 0.0
    %1180 = vmatpush.msra.mxu0 0.0
    %1181 = vmatpush.msra.mxu0 0.0
    %1182 = vmatpush.msra.mxu0 0.0
    %1183 = vmatpush.msra.mxu0 0.0
    %1184 = vmatpush.msra.mxu0 0.0
    %1185 = vmatpush.msra.mxu0 %v1167
    %1186 = vmatpush.msra.mxu0 %v1165
    %1187 = vmatpush.msra.mxu0 %v1163
    %1188 = vmatpush.msra.mxu0 %v1161
    %1189 = vmatpush.msra.mxu0 %v1159
    %1190 = vmatpush.msra.mxu0 %v1157
    %1191 = vmatmul.f32.gmra.mxu0 %v1170
    %v1192 = vpop.f32.mrf.mxu0
    %v1193 = vadd.f32 0.0, %v1192
    %1194 = vmatmul.f32.gmra.mxu0 %v1173
    %v1195 = vpop.f32.mrf.mxu0
    %v1196 = vadd.f32 0.0, %v1195
    %1197 = vdwg.mxu0
    %1198 = vmatpush.msra.mxu0 0.0
    %1199 = vmatpush.msra.mxu0 0.0
    %1200 = vmatpush.msra.mxu0 0.0
    %1201 = vmatpush.msra.mxu0 0.0
    %1202 = vmatpush.msra.mxu0 0.0
    %1203 = vmatpush.msra.mxu0 0.0
    %1204 = vmatpush.msra.mxu0 0.0
    %1205 = vmatpush.msra.mxu0 0.0
    %1206 = vmatpush.msra.mxu0 0.0
    %1207 = vmatpush.msra.mxu0 0.0
    %1208 = vmatpush.msra.mxu0 %v1168
    %1209 = vmatpush.msra.mxu0 %v1166
    %1210 = vmatpush.msra.mxu0 %v1164
    %1211 = vmatpush.msra.mxu0 %v1162
    %1212 = vmatpush.msra.mxu0 %v1160
    %1213 = vmatpush.msra.mxu0 %v1158
    %1214 = vmatmul.f32.gmra.mxu0 %v1170
    %v1215 = vpop.f32.mrf.mxu0
    %v1216 = vadd.f32 0.0, %v1215
    %1217 = vmatmul.f32.gmra.mxu0 %v1173
    %v1218 = vpop.f32.mrf.mxu0
    %v1219 = vadd.f32 0.0, %v1218
    %1220 = vdwg.mxu0
    %1222 = vrot.lane.b32.xlu0 %v1193, 80
    %v1223 = vpop.permute.xlu0 %1222
    %v1224 = vsel %vm260, %v1193, 0
    %v1226 = vsel %vm260, %v1223, 0
    %1228 = vmatpush.xpose.msra.mxu0 0.0
    %1229 = vmatpush.xpose.msra.mxu0 0.0
    %1230 = vmatpush.xpose.msra.mxu0 0.0
    %1231 = vmatpush.xpose.msra.mxu0 0.0
    %1232 = vmatpush.xpose.msra.mxu0 0.0
    %1233 = vmatpush.xpose.msra.mxu0 0.0
    %1234 = vmatpush.xpose.msra.mxu0 0.0
    %1235 = vmatpush.xpose.msra.mxu0 0.0
    %1236 = vmatpush.xpose.msra.mxu0 0.0
    %1237 = vmatpush.xpose.msra.mxu0 0.0
    %1238 = vmatpush.xpose.msra.mxu0 0.0
    %1239 = vmatpush.xpose.msra.mxu0 0.0
    %1240 = vmatpush.xpose.msra.mxu0 0.0
    %1241 = vmatpush.xpose.msra.mxu0 0.0
    %1242 = vmatpush.xpose.msra.mxu0 0.0
    %1243 = vmatpush.xpose.msra.mxu0 %v1226
    %1244 = vmatmul.f32.gmra.mxu0 %v1224
    %v1245 = vpop.f32.mrf.mxu0
    %v1246 = vadd.f32 0.0, %v1245
    %1247 = vdwg.mxu0
    %1249 = vrot.lane.b32.xlu0 %v1196, 80
    %v1250 = vpop.permute.xlu0 %1249
    %v1251 = vsel %vm260, %v1196, 0
    %v1253 = vsel %vm260, %v1250, 0
    %1255 = vmatpush.xpose.msra.mxu0 0.0
    %1256 = vmatpush.xpose.msra.mxu0 0.0
    %1257 = vmatpush.xpose.msra.mxu0 0.0
    %1258 = vmatpush.xpose.msra.mxu0 0.0
    %1259 = vmatpush.xpose.msra.mxu0 0.0
    %1260 = vmatpush.xpose.msra.mxu0 0.0
    %1261 = vmatpush.xpose.msra.mxu0 0.0
    %1262 = vmatpush.xpose.msra.mxu0 0.0
    %1263 = vmatpush.xpose.msra.mxu0 0.0
    %1264 = vmatpush.xpose.msra.mxu0 0.0
    %1265 = vmatpush.xpose.msra.mxu0 0.0
    %1266 = vmatpush.xpose.msra.mxu0 0.0
    %1267 = vmatpush.xpose.msra.mxu0 0.0
    %1268 = vmatpush.xpose.msra.mxu0 0.0
    %1269 = vmatpush.xpose.msra.mxu0 0.0
    %1270 = vmatpush.xpose.msra.mxu0 %v1253
    %1271 = vmatmul.f32.gmra.mxu0 %v1251
    %v1272 = vpop.f32.mrf.mxu0
    %v1273 = vadd.f32 0.0, %v1272
    %1274 = vdwg.mxu0
    %v1275 = vmul.f32 %v1246, 0.35355338
    %v1276 = vmul.f32 %v1273, 0.35355338
    %v1277 = vsel %vm260, %v1275, -inf
    %1278 = vmax.xlane.f32.xlu0 %v1277
    %v1279 = vpop.xlane.xlu0 %1278
    %v1280 = vsel %vm260, %v1276, -inf
    %1281 = vmax.xlane.f32.xlu0 %v1280
    %v1282 = vpop.xlane.xlu0 %1281
    %v1283 = vsub.f32 %v1275, %v1279
    %v1284 = vsub.f32 %v1276, %v1282
    %v1285 = vmul.f32 %v1283, 1.442695
    %v1286 = vpow.pop %v1285
    %v1287 = vmul.f32 %v1284, 1.442695
    %v1288 = vpow.pop %v1287
    %v1289 = vsel %vm260, %v1286, 0.0
    %1290 = vadd.xlane.f32.xlu0 %v1289
    %v1291 = vpop.xlane.xlu0 %1290
    %v1292 = vsel %vm260, %v1288, 0.0
    %1293 = vadd.xlane.f32.xlu0 %v1292
    %v1294 = vpop.xlane.xlu0 %1293
    %v1295 = vrcp.pop %v1291
    %v1296 = vrcp.pop %v1294
    %v1297 = vmul.f32 %v1286, %v1295
    %v1298 = vmul.f32 %v1288, %v1296
    %1299 = vrot.lane.b32.xlu0 %v1193, 32
    %v1300 = vpop.permute.xlu0 %1299
    %v1303 = vsel %vm260, %v1297, 0
    %1305 = vmatpush.msra.mxu0 0.0
    %1306 = vmatpush.msra.mxu0 0.0
    %1307 = vmatpush.msra.mxu0 0.0
    %1308 = vmatpush.msra.mxu0 0.0
    %1309 = vmatpush.msra.mxu0 0.0
    %1310 = vmatpush.msra.mxu0 0.0
    %1311 = vmatpush.msra.mxu0 0.0
    %1312 = vmatpush.msra.mxu0 0.0
    %1313 = vmatpush.msra.mxu0 0.0
    %1314 = vmatpush.msra.mxu0 0.0
    %1315 = vmatpush.msra.mxu0 0.0
    %1316 = vmatpush.msra.mxu0 0.0
    %1317 = vmatpush.msra.mxu0 0.0
    %1318 = vmatpush.msra.mxu0 0.0
    %1319 = vmatpush.msra.mxu0 0.0
    %1320 = vmatpush.msra.mxu0 %v1300
    %1321 = vmatmul.f32.gmra.mxu0 %v1303
    %v1322 = vpop.f32.mrf.mxu0
    %v1323 = vadd.f32 0.0, %v1322
    %1324 = vdwg.mxu0
    %1325 = vrot.lane.b32.xlu0 %v1196, 32
    %v1326 = vpop.permute.xlu0 %1325
    %v1329 = vsel %vm260, %v1298, 0
    %1331 = vmatpush.msra.mxu0 0.0
    %1332 = vmatpush.msra.mxu0 0.0
    %1333 = vmatpush.msra.mxu0 0.0
    %1334 = vmatpush.msra.mxu0 0.0
    %1335 = vmatpush.msra.mxu0 0.0
    %1336 = vmatpush.msra.mxu0 0.0
    %1337 = vmatpush.msra.mxu0 0.0
    %1338 = vmatpush.msra.mxu0 0.0
    %1339 = vmatpush.msra.mxu0 0.0
    %1340 = vmatpush.msra.mxu0 0.0
    %1341 = vmatpush.msra.mxu0 0.0
    %1342 = vmatpush.msra.mxu0 0.0
    %1343 = vmatpush.msra.mxu0 0.0
    %1344 = vmatpush.msra.mxu0 0.0
    %1345 = vmatpush.msra.mxu0 0.0
    %1346 = vmatpush.msra.mxu0 %v1326
    %1347 = vmatmul.f32.gmra.mxu0 %v1329
    %v1348 = vpop.f32.mrf.mxu0
    %v1349 = vadd.f32 0.0, %v1348
    %1350 = vdwg.mxu0
    %1351 = vrot.lane.b32.xlu0 %v1193, 120
    %v1352 = vpop.permute.xlu0 %1351
    %1353 = vrot.lane.b32.xlu0 %v1193, 72
    %v1354 = vpop.permute.xlu0 %1353
    %v1355 = vsel %vm260, %v1352, 0
    %v1357 = vsel %vm260, %v1354, 0
    %1359 = vmatpush.xpose.msra.mxu0 0.0
    %1360 = vmatpush.xpose.msra.mxu0 0.0
    %1361 = vmatpush.xpose.msra.mxu0 0.0
    %1362 = vmatpush.xpose.msra.mxu0 0.0
    %1363 = vmatpush.xpose.msra.mxu0 0.0
    %1364 = vmatpush.xpose.msra.mxu0 0.0
    %1365 = vmatpush.xpose.msra.mxu0 0.0
    %1366 = vmatpush.xpose.msra.mxu0 0.0
    %1367 = vmatpush.xpose.msra.mxu0 0.0
    %1368 = vmatpush.xpose.msra.mxu0 0.0
    %1369 = vmatpush.xpose.msra.mxu0 0.0
    %1370 = vmatpush.xpose.msra.mxu0 0.0
    %1371 = vmatpush.xpose.msra.mxu0 0.0
    %1372 = vmatpush.xpose.msra.mxu0 0.0
    %1373 = vmatpush.xpose.msra.mxu0 0.0
    %1374 = vmatpush.xpose.msra.mxu0 %v1357
    %1375 = vmatmul.f32.gmra.mxu0 %v1355
    %v1376 = vpop.f32.mrf.mxu0
    %v1377 = vadd.f32 0.0, %v1376
    %1378 = vdwg.mxu0
    %1379 = vrot.lane.b32.xlu0 %v1196, 120
    %v1380 = vpop.permute.xlu0 %1379
    %1381 = vrot.lane.b32.xlu0 %v1196, 72
    %v1382 = vpop.permute.xlu0 %1381
    %v1383 = vsel %vm260, %v1380, 0
    %v1385 = vsel %vm260, %v1382, 0
    %1387 = vmatpush.xpose.msra.mxu0 0.0
    %1388 = vmatpush.xpose.msra.mxu0 0.0
    %1389 = vmatpush.xpose.msra.mxu0 0.0
    %1390 = vmatpush.xpose.msra.mxu0 0.0
    %1391 = vmatpush.xpose.msra.mxu0 0.0
    %1392 = vmatpush.xpose.msra.mxu0 0.0
    %1393 = vmatpush.xpose.msra.mxu0 0.0
    %1394 = vmatpush.xpose.msra.mxu0 0.0
    %1395 = vmatpush.xpose.msra.mxu0 0.0
    %1396 = vmatpush.xpose.msra.mxu0 0.0
    %1397 = vmatpush.xpose.msra.mxu0 0.0
    %1398 = vmatpush.xpose.msra.mxu0 0.0
    %1399 = vmatpush.xpose.msra.mxu0 0.0
    %1400 = vmatpush.xpose.msra.mxu0 0.0
    %1401 = vmatpush.xpose.msra.mxu0 0.0
    %1402 = vmatpush.xpose.msra.mxu0 %v1385
    %1403 = vmatmul.f32.gmra.mxu0 %v1383
    %v1404 = vpop.f32.mrf.mxu0
    %v1405 = vadd.f32 0.0, %v1404
    %1406 = vdwg.mxu0
    %v1407 = vmul.f32 %v1377, 0.35355338
    %v1408 = vmul.f32 %v1405, 0.35355338
    %v1409 = vsel %vm260, %v1407, -inf
    %1410 = vmax.xlane.f32.xlu0 %v1409
    %v1411 = vpop.xlane.xlu0 %1410
    %v1412 = vsel %vm260, %v1408, -inf
    %1413 = vmax.xlane.f32.xlu0 %v1412
    %v1414 = vpop.xlane.xlu0 %1413
    %v1415 = vsub.f32 %v1407, %v1411
    %v1416 = vsub.f32 %v1408, %v1414
    %v1417 = vmul.f32 %v1415, 1.442695
    %v1418 = vpow.pop %v1417
    %v1419 = vmul.f32 %v1416, 1.442695
    %v1420 = vpow.pop %v1419
    %v1421 = vsel %vm260, %v1418, 0.0
    %1422 = vadd.xlane.f32.xlu0 %v1421
    %v1423 = vpop.xlane.xlu0 %1422
    %v1424 = vsel %vm260, %v1420, 0.0
    %1425 = vadd.xlane.f32.xlu0 %v1424
    %v1426 = vpop.xlane.xlu0 %1425
    %v1427 = vrcp.pop %v1423
    %v1428 = vrcp.pop %v1426
    %v1429 = vmul.f32 %v1418, %v1427
    %v1430 = vmul.f32 %v1420, %v1428
    %1431 = vrot.lane.b32.xlu0 %v1193, 24
    %v1432 = vpop.permute.xlu0 %1431
    %v1435 = vsel %vm260, %v1429, 0
    %1437 = vmatpush.msra.mxu0 0.0
    %1438 = vmatpush.msra.mxu0 0.0
    %1439 = vmatpush.msra.mxu0 0.0
    %1440 = vmatpush.msra.mxu0 0.0
    %1441 = vmatpush.msra.mxu0 0.0
    %1442 = vmatpush.msra.mxu0 0.0
    %1443 = vmatpush.msra.mxu0 0.0
    %1444 = vmatpush.msra.mxu0 0.0
    %1445 = vmatpush.msra.mxu0 0.0
    %1446 = vmatpush.msra.mxu0 0.0
    %1447 = vmatpush.msra.mxu0 0.0
    %1448 = vmatpush.msra.mxu0 0.0
    %1449 = vmatpush.msra.mxu0 0.0
    %1450 = vmatpush.msra.mxu0 0.0
    %1451 = vmatpush.msra.mxu0 0.0
    %1452 = vmatpush.msra.mxu0 %v1432
    %1453 = vmatmul.f32.gmra.mxu0 %v1435
    %v1454 = vpop.f32.mrf.mxu0
    %v1455 = vadd.f32 0.0, %v1454
    %1456 = vdwg.mxu0
    %1457 = vrot.lane.b32.xlu0 %v1196, 24
    %v1458 = vpop.permute.xlu0 %1457
    %v1461 = vsel %vm260, %v1430, 0
    %1463 = vmatpush.msra.mxu0 0.0
    %1464 = vmatpush.msra.mxu0 0.0
    %1465 = vmatpush.msra.mxu0 0.0
    %1466 = vmatpush.msra.mxu0 0.0
    %1467 = vmatpush.msra.mxu0 0.0
    %1468 = vmatpush.msra.mxu0 0.0
    %1469 = vmatpush.msra.mxu0 0.0
    %1470 = vmatpush.msra.mxu0 0.0
    %1471 = vmatpush.msra.mxu0 0.0
    %1472 = vmatpush.msra.mxu0 0.0
    %1473 = vmatpush.msra.mxu0 0.0
    %1474 = vmatpush.msra.mxu0 0.0
    %1475 = vmatpush.msra.mxu0 0.0
    %1476 = vmatpush.msra.mxu0 0.0
    %1477 = vmatpush.msra.mxu0 0.0
    %1478 = vmatpush.msra.mxu0 %v1458
    %1479 = vmatmul.f32.gmra.mxu0 %v1461
    %v1480 = vpop.f32.mrf.mxu0
    %v1481 = vadd.f32 0.0, %v1480
    %1482 = vdwg.mxu0
    %1483 = vrot.lane.b32.xlu0 %v1193, 112
    %v1484 = vpop.permute.xlu0 %1483
    %1485 = vrot.lane.b32.xlu0 %v1193, 64
    %v1486 = vpop.permute.xlu0 %1485
    %v1487 = vsel %vm260, %v1484, 0
    %v1489 = vsel %vm260, %v1486, 0
    %1491 = vmatpush.xpose.msra.mxu0 0.0
    %1492 = vmatpush.xpose.msra.mxu0 0.0
    %1493 = vmatpush.xpose.msra.mxu0 0.0
    %1494 = vmatpush.xpose.msra.mxu0 0.0
    %1495 = vmatpush.xpose.msra.mxu0 0.0
    %1496 = vmatpush.xpose.msra.mxu0 0.0
    %1497 = vmatpush.xpose.msra.mxu0 0.0
    %1498 = vmatpush.xpose.msra.mxu0 0.0
    %1499 = vmatpush.xpose.msra.mxu0 0.0
    %1500 = vmatpush.xpose.msra.mxu0 0.0
    %1501 = vmatpush.xpose.msra.mxu0 0.0
    %1502 = vmatpush.xpose.msra.mxu0 0.0
    %1503 = vmatpush.xpose.msra.mxu0 0.0
    %1504 = vmatpush.xpose.msra.mxu0 0.0
    %1505 = vmatpush.xpose.msra.mxu0 0.0
    %1506 = vmatpush.xpose.msra.mxu0 %v1489
    %1507 = vmatmul.f32.gmra.mxu0 %v1487
    %v1508 = vpop.f32.mrf.mxu0
    %v1509 = vadd.f32 0.0, %v1508
    %1510 = vdwg.mxu0
    %1511 = vrot.lane.b32.xlu0 %v1196, 112
    %v1512 = vpop.permute.xlu0 %1511
    %1513 = vrot.lane.b32.xlu0 %v1196, 64
    %v1514 = vpop.permute.xlu0 %1513
    %v1515 = vsel %vm260, %v1512, 0
    %v1517 = vsel %vm260, %v1514, 0
    %1519 = vmatpush.xpose.msra.mxu0 0.0
    %1520 = vmatpush.xpose.msra.mxu0 0.0
    %1521 = vmatpush.xpose.msra.mxu0 0.0
    %1522 = vmatpush.xpose.msra.mxu0 0.0
    %1523 = vmatpush.xpose.msra.mxu0 0.0
    %1524 = vmatpush.xpose.msra.mxu0 0.0
    %1525 = vmatpush.xpose.msra.mxu0 0.0
    %1526 = vmatpush.xpose.msra.mxu0 0.0
    %1527 = vmatpush.xpose.msra.mxu0 0.0
    %1528 = vmatpush.xpose.msra.mxu0 0.0
    %1529 = vmatpush.xpose.msra.mxu0 0.0
    %1530 = vmatpush.xpose.msra.mxu0 0.0
    %1531 = vmatpush.xpose.msra.mxu0 0.0
    %1532 = vmatpush.xpose.msra.mxu0 0.0
    %1533 = vmatpush.xpose.msra.mxu0 0.0
    %1534 = vmatpush.xpose.msra.mxu0 %v1517
    %1535 = vmatmul.f32.gmra.mxu0 %v1515
    %v1536 = vpop.f32.mrf.mxu0
    %v1537 = vadd.f32 0.0, %v1536
    %1538 = vdwg.mxu0
    %v1539 = vmul.f32 %v1509, 0.35355338
    %v1540 = vmul.f32 %v1537, 0.35355338
    %v1541 = vsel %vm260, %v1539, -inf
    %1542 = vmax.xlane.f32.xlu0 %v1541
    %v1543 = vpop.xlane.xlu0 %1542
    %v1544 = vsel %vm260, %v1540, -inf
    %1545 = vmax.xlane.f32.xlu0 %v1544
    %v1546 = vpop.xlane.xlu0 %1545
    %v1547 = vsub.f32 %v1539, %v1543
    %v1548 = vsub.f32 %v1540, %v1546
    %v1549 = vmul.f32 %v1547, 1.442695
    %v1550 = vpow.pop %v1549
    %v1551 = vmul.f32 %v1548, 1.442695
    %v1552 = vpow.pop %v1551
    %v1553 = vsel %vm260, %v1550, 0.0
    %1554 = vadd.xlane.f32.xlu0 %v1553
    %v1555 = vpop.xlane.xlu0 %1554
    %v1556 = vsel %vm260, %v1552, 0.0
    %1557 = vadd.xlane.f32.xlu0 %v1556
    %v1558 = vpop.xlane.xlu0 %1557
    %v1559 = vrcp.pop %v1555
    %v1560 = vrcp.pop %v1558
    %v1561 = vmul.f32 %v1550, %v1559
    %v1562 = vmul.f32 %v1552, %v1560
    %1563 = vrot.lane.b32.xlu0 %v1193, 16
    %v1564 = vpop.permute.xlu0 %1563
    %v1567 = vsel %vm260, %v1561, 0
    %1569 = vmatpush.msra.mxu0 0.0
    %1570 = vmatpush.msra.mxu0 0.0
    %1571 = vmatpush.msra.mxu0 0.0
    %1572 = vmatpush.msra.mxu0 0.0
    %1573 = vmatpush.msra.mxu0 0.0
    %1574 = vmatpush.msra.mxu0 0.0
    %1575 = vmatpush.msra.mxu0 0.0
    %1576 = vmatpush.msra.mxu0 0.0
    %1577 = vmatpush.msra.mxu0 0.0
    %1578 = vmatpush.msra.mxu0 0.0
    %1579 = vmatpush.msra.mxu0 0.0
    %1580 = vmatpush.msra.mxu0 0.0
    %1581 = vmatpush.msra.mxu0 0.0
    %1582 = vmatpush.msra.mxu0 0.0
    %1583 = vmatpush.msra.mxu0 0.0
    %1584 = vmatpush.msra.mxu0 %v1564
    %1585 = vmatmul.f32.gmra.mxu0 %v1567
    %v1586 = vpop.f32.mrf.mxu0
    %v1587 = vadd.f32 0.0, %v1586
    %1588 = vdwg.mxu0
    %1589 = vrot.lane.b32.xlu0 %v1196, 16
    %v1590 = vpop.permute.xlu0 %1589
    %v1593 = vsel %vm260, %v1562, 0
    %1595 = vmatpush.msra.mxu0 0.0
    %1596 = vmatpush.msra.mxu0 0.0
    %1597 = vmatpush.msra.mxu0 0.0
    %1598 = vmatpush.msra.mxu0 0.0
    %1599 = vmatpush.msra.mxu0 0.0
    %1600 = vmatpush.msra.mxu0 0.0
    %1601 = vmatpush.msra.mxu0 0.0
    %1602 = vmatpush.msra.mxu0 0.0
    %1603 = vmatpush.msra.mxu0 0.0
    %1604 = vmatpush.msra.mxu0 0.0
    %1605 = vmatpush.msra.mxu0 0.0
    %1606 = vmatpush.msra.mxu0 0.0
    %1607 = vmatpush.msra.mxu0 0.0
    %1608 = vmatpush.msra.mxu0 0.0
    %1609 = vmatpush.msra.mxu0 0.0
    %1610 = vmatpush.msra.mxu0 %v1590
    %1611 = vmatmul.f32.gmra.mxu0 %v1593
    %v1612 = vpop.f32.mrf.mxu0
    %v1613 = vadd.f32 0.0, %v1612
    %1614 = vdwg.mxu0
    %1615 = vrot.lane.b32.xlu0 %v1193, 104
    %v1616 = vpop.permute.xlu0 %1615
    %1617 = vrot.lane.b32.xlu0 %v1193, 56
    %v1618 = vpop.permute.xlu0 %1617
    %v1619 = vsel %vm260, %v1616, 0
    %v1621 = vsel %vm260, %v1618, 0
    %1623 = vmatpush.xpose.msra.mxu0 0.0
    %1624 = vmatpush.xpose.msra.mxu0 0.0
    %1625 = vmatpush.xpose.msra.mxu0 0.0
    %1626 = vmatpush.xpose.msra.mxu0 0.0
    %1627 = vmatpush.xpose.msra.mxu0 0.0
    %1628 = vmatpush.xpose.msra.mxu0 0.0
    %1629 = vmatpush.xpose.msra.mxu0 0.0
    %1630 = vmatpush.xpose.msra.mxu0 0.0
    %1631 = vmatpush.xpose.msra.mxu0 0.0
    %1632 = vmatpush.xpose.msra.mxu0 0.0
    %1633 = vmatpush.xpose.msra.mxu0 0.0
    %1634 = vmatpush.xpose.msra.mxu0 0.0
    %1635 = vmatpush.xpose.msra.mxu0 0.0
    %1636 = vmatpush.xpose.msra.mxu0 0.0
    %1637 = vmatpush.xpose.msra.mxu0 0.0
    %1638 = vmatpush.xpose.msra.mxu0 %v1621
    %1639 = vmatmul.f32.gmra.mxu0 %v1619
    %v1640 = vpop.f32.mrf.mxu0
    %v1641 = vadd.f32 0.0, %v1640
    %1642 = vdwg.mxu0
    %1643 = vrot.lane.b32.xlu0 %v1196, 104
    %v1644 = vpop.permute.xlu0 %1643
    %1645 = vrot.lane.b32.xlu0 %v1196, 56
    %v1646 = vpop.permute.xlu0 %1645
    %v1647 = vsel %vm260, %v1644, 0
    %v1649 = vsel %vm260, %v1646, 0
    %1651 = vmatpush.xpose.msra.mxu0 0.0
    %1652 = vmatpush.xpose.msra.mxu0 0.0
    %1653 = vmatpush.xpose.msra.mxu0 0.0
    %1654 = vmatpush.xpose.msra.mxu0 0.0
    %1655 = vmatpush.xpose.msra.mxu0 0.0
    %1656 = vmatpush.xpose.msra.mxu0 0.0
    %1657 = vmatpush.xpose.msra.mxu0 0.0
    %1658 = vmatpush.xpose.msra.mxu0 0.0
    %1659 = vmatpush.xpose.msra.mxu0 0.0
    %1660 = vmatpush.xpose.msra.mxu0 0.0
    %1661 = vmatpush.xpose.msra.mxu0 0.0
    %1662 = vmatpush.xpose.msra.mxu0 0.0
    %1663 = vmatpush.xpose.msra.mxu0 0.0
    %1664 = vmatpush.xpose.msra.mxu0 0.0
    %1665 = vmatpush.xpose.msra.mxu0 0.0
    %1666 = vmatpush.xpose.msra.mxu0 %v1649
    %1667 = vmatmul.f32.gmra.mxu0 %v1647
    %v1668 = vpop.f32.mrf.mxu0
    %v1669 = vadd.f32 0.0, %v1668
    %1670 = vdwg.mxu0
    %v1671 = vmul.f32 %v1641, 0.35355338
    %v1672 = vmul.f32 %v1669, 0.35355338
    %v1673 = vsel %vm260, %v1671, -inf
    %1674 = vmax.xlane.f32.xlu0 %v1673
    %v1675 = vpop.xlane.xlu0 %1674
    %v1676 = vsel %vm260, %v1672, -inf
    %1677 = vmax.xlane.f32.xlu0 %v1676
    %v1678 = vpop.xlane.xlu0 %1677
    %v1679 = vsub.f32 %v1671, %v1675
    %v1680 = vsub.f32 %v1672, %v1678
    %v1681 = vmul.f32 %v1679, 1.442695
    %v1682 = vpow.pop %v1681
    %v1683 = vmul.f32 %v1680, 1.442695
    %v1684 = vpow.pop %v1683
    %v1685 = vsel %vm260, %v1682, 0.0
    %1686 = vadd.xlane.f32.xlu0 %v1685
    %v1687 = vpop.xlane.xlu0 %1686
    %v1688 = vsel %vm260, %v1684, 0.0
    %1689 = vadd.xlane.f32.xlu0 %v1688
    %v1690 = vpop.xlane.xlu0 %1689
    %v1691 = vrcp.pop %v1687
    %v1692 = vrcp.pop %v1690
    %v1693 = vmul.f32 %v1682, %v1691
    %v1694 = vmul.f32 %v1684, %v1692
    %1695 = vrot.lane.b32.xlu0 %v1193, 8
    %v1696 = vpop.permute.xlu0 %1695
    %v1699 = vsel %vm260, %v1693, 0
    %1701 = vmatpush.msra.mxu0 0.0
    %1702 = vmatpush.msra.mxu0 0.0
    %1703 = vmatpush.msra.mxu0 0.0
    %1704 = vmatpush.msra.mxu0 0.0
    %1705 = vmatpush.msra.mxu0 0.0
    %1706 = vmatpush.msra.mxu0 0.0
    %1707 = vmatpush.msra.mxu0 0.0
    %1708 = vmatpush.msra.mxu0 0.0
    %1709 = vmatpush.msra.mxu0 0.0
    %1710 = vmatpush.msra.mxu0 0.0
    %1711 = vmatpush.msra.mxu0 0.0
    %1712 = vmatpush.msra.mxu0 0.0
    %1713 = vmatpush.msra.mxu0 0.0
    %1714 = vmatpush.msra.mxu0 0.0
    %1715 = vmatpush.msra.mxu0 0.0
    %1716 = vmatpush.msra.mxu0 %v1696
    %1717 = vmatmul.f32.gmra.mxu0 %v1699
    %v1718 = vpop.f32.mrf.mxu0
    %v1719 = vadd.f32 0.0, %v1718
    %1720 = vdwg.mxu0
    %1721 = vrot.lane.b32.xlu0 %v1196, 8
    %v1722 = vpop.permute.xlu0 %1721
    %v1725 = vsel %vm260, %v1694, 0
    %1727 = vmatpush.msra.mxu0 0.0
    %1728 = vmatpush.msra.mxu0 0.0
    %1729 = vmatpush.msra.mxu0 0.0
    %1730 = vmatpush.msra.mxu0 0.0
    %1731 = vmatpush.msra.mxu0 0.0
    %1732 = vmatpush.msra.mxu0 0.0
    %1733 = vmatpush.msra.mxu0 0.0
    %1734 = vmatpush.msra.mxu0 0.0
    %1735 = vmatpush.msra.mxu0 0.0
    %1736 = vmatpush.msra.mxu0 0.0
    %1737 = vmatpush.msra.mxu0 0.0
    %1738 = vmatpush.msra.mxu0 0.0
    %1739 = vmatpush.msra.mxu0 0.0
    %1740 = vmatpush.msra.mxu0 0.0
    %1741 = vmatpush.msra.mxu0 0.0
    %1742 = vmatpush.msra.mxu0 %v1722
    %1743 = vmatmul.f32.gmra.mxu0 %v1725
    %v1744 = vpop.f32.mrf.mxu0
    %v1745 = vadd.f32 0.0, %v1744
    %1746 = vdwg.mxu0
    %1747 = vrot.lane.b32.xlu0 %v1193, 96
    %v1748 = vpop.permute.xlu0 %1747
    %1749 = vrot.lane.b32.xlu0 %v1193, 48
    %v1750 = vpop.permute.xlu0 %1749
    %v1751 = vsel %vm260, %v1748, 0
    %v1753 = vsel %vm260, %v1750, 0
    %1755 = vmatpush.xpose.msra.mxu0 0.0
    %1756 = vmatpush.xpose.msra.mxu0 0.0
    %1757 = vmatpush.xpose.msra.mxu0 0.0
    %1758 = vmatpush.xpose.msra.mxu0 0.0
    %1759 = vmatpush.xpose.msra.mxu0 0.0
    %1760 = vmatpush.xpose.msra.mxu0 0.0
    %1761 = vmatpush.xpose.msra.mxu0 0.0
    %1762 = vmatpush.xpose.msra.mxu0 0.0
    %1763 = vmatpush.xpose.msra.mxu0 0.0
    %1764 = vmatpush.xpose.msra.mxu0 0.0
    %1765 = vmatpush.xpose.msra.mxu0 0.0
    %1766 = vmatpush.xpose.msra.mxu0 0.0
    %1767 = vmatpush.xpose.msra.mxu0 0.0
    %1768 = vmatpush.xpose.msra.mxu0 0.0
    %1769 = vmatpush.xpose.msra.mxu0 0.0
    %1770 = vmatpush.xpose.msra.mxu0 %v1753
    %1771 = vmatmul.f32.gmra.mxu0 %v1751
    %v1772 = vpop.f32.mrf.mxu0
    %v1773 = vadd.f32 0.0, %v1772
    %1774 = vdwg.mxu0
    %1775 = vrot.lane.b32.xlu0 %v1196, 96
    %v1776 = vpop.permute.xlu0 %1775
    %1777 = vrot.lane.b32.xlu0 %v1196, 48
    %v1778 = vpop.permute.xlu0 %1777
    %v1779 = vsel %vm260, %v1776, 0
    %v1781 = vsel %vm260, %v1778, 0
    %1783 = vmatpush.xpose.msra.mxu0 0.0
    %1784 = vmatpush.xpose.msra.mxu0 0.0
    %1785 = vmatpush.xpose.msra.mxu0 0.0
    %1786 = vmatpush.xpose.msra.mxu0 0.0
    %1787 = vmatpush.xpose.msra.mxu0 0.0
    %1788 = vmatpush.xpose.msra.mxu0 0.0
    %1789 = vmatpush.xpose.msra.mxu0 0.0
    %1790 = vmatpush.xpose.msra.mxu0 0.0
    %1791 = vmatpush.xpose.msra.mxu0 0.0
    %1792 = vmatpush.xpose.msra.mxu0 0.0
    %1793 = vmatpush.xpose.msra.mxu0 0.0
    %1794 = vmatpush.xpose.msra.mxu0 0.0
    %1795 = vmatpush.xpose.msra.mxu0 0.0
    %1796 = vmatpush.xpose.msra.mxu0 0.0
    %1797 = vmatpush.xpose.msra.mxu0 0.0
    %1798 = vmatpush.xpose.msra.mxu0 %v1781
    %1799 = vmatmul.f32.gmra.mxu0 %v1779
    %v1800 = vpop.f32.mrf.mxu0
    %v1801 = vadd.f32 0.0, %v1800
    %1802 = vdwg.mxu0
    %v1803 = vmul.f32 %v1773, 0.35355338
    %v1804 = vmul.f32 %v1801, 0.35355338
    %v1805 = vsel %vm260, %v1803, -inf
    %1806 = vmax.xlane.f32.xlu0 %v1805
    %v1807 = vpop.xlane.xlu0 %1806
    %v1808 = vsel %vm260, %v1804, -inf
    %1809 = vmax.xlane.f32.xlu0 %v1808
    %v1810 = vpop.xlane.xlu0 %1809
    %v1811 = vsub.f32 %v1803, %v1807
    %v1812 = vsub.f32 %v1804, %v1810
    %v1813 = vmul.f32 %v1811, 1.442695
    %v1814 = vpow.pop %v1813
    %v1815 = vmul.f32 %v1812, 1.442695
    %v1816 = vpow.pop %v1815
    %v1817 = vsel %vm260, %v1814, 0.0
    %1818 = vadd.xlane.f32.xlu0 %v1817
    %v1819 = vpop.xlane.xlu0 %1818
    %v1820 = vsel %vm260, %v1816, 0.0
    %1821 = vadd.xlane.f32.xlu0 %v1820
    %v1822 = vpop.xlane.xlu0 %1821
    %v1823 = vrcp.pop %v1819
    %v1824 = vrcp.pop %v1822
    %v1825 = vmul.f32 %v1814, %v1823
    %v1826 = vmul.f32 %v1816, %v1824
    %v1828 = vsel %vm260, %v1825, 0
    %1830 = vmatpush.msra.mxu0 0.0
    %1831 = vmatpush.msra.mxu0 0.0
    %1832 = vmatpush.msra.mxu0 0.0
    %1833 = vmatpush.msra.mxu0 0.0
    %1834 = vmatpush.msra.mxu0 0.0
    %1835 = vmatpush.msra.mxu0 0.0
    %1836 = vmatpush.msra.mxu0 0.0
    %1837 = vmatpush.msra.mxu0 0.0
    %1838 = vmatpush.msra.mxu0 0.0
    %1839 = vmatpush.msra.mxu0 0.0
    %1840 = vmatpush.msra.mxu0 0.0
    %1841 = vmatpush.msra.mxu0 0.0
    %1842 = vmatpush.msra.mxu0 0.0
    %1843 = vmatpush.msra.mxu0 0.0
    %1844 = vmatpush.msra.mxu0 0.0
    %1845 = vmatpush.msra.mxu0 %v1216
    %1846 = vmatmul.f32.gmra.mxu0 %v1828
    %v1847 = vpop.f32.mrf.mxu0
    %v1848 = vadd.f32 0.0, %v1847
    %1849 = vdwg.mxu0
    %v1851 = vsel %vm260, %v1826, 0
    %1853 = vmatpush.msra.mxu0 0.0
    %1854 = vmatpush.msra.mxu0 0.0
    %1855 = vmatpush.msra.mxu0 0.0
    %1856 = vmatpush.msra.mxu0 0.0
    %1857 = vmatpush.msra.mxu0 0.0
    %1858 = vmatpush.msra.mxu0 0.0
    %1859 = vmatpush.msra.mxu0 0.0
    %1860 = vmatpush.msra.mxu0 0.0
    %1861 = vmatpush.msra.mxu0 0.0
    %1862 = vmatpush.msra.mxu0 0.0
    %1863 = vmatpush.msra.mxu0 0.0
    %1864 = vmatpush.msra.mxu0 0.0
    %1865 = vmatpush.msra.mxu0 0.0
    %1866 = vmatpush.msra.mxu0 0.0
    %1867 = vmatpush.msra.mxu0 0.0
    %1868 = vmatpush.msra.mxu0 %v1219
    %1869 = vmatmul.f32.gmra.mxu0 %v1851
    %v1870 = vpop.f32.mrf.mxu0
    %v1871 = vadd.f32 0.0, %v1870
    %1872 = vdwg.mxu0
    %1873 = vrot.lane.b32.xlu0 %v1193, 88
    %v1874 = vpop.permute.xlu0 %1873
    %1875 = vrot.lane.b32.xlu0 %v1193, 40
    %v1876 = vpop.permute.xlu0 %1875
    %v1877 = vsel %vm260, %v1874, 0
    %v1879 = vsel %vm260, %v1876, 0
    %1881 = vmatpush.xpose.msra.mxu0 0.0
    %1882 = vmatpush.xpose.msra.mxu0 0.0
    %1883 = vmatpush.xpose.msra.mxu0 0.0
    %1884 = vmatpush.xpose.msra.mxu0 0.0
    %1885 = vmatpush.xpose.msra.mxu0 0.0
    %1886 = vmatpush.xpose.msra.mxu0 0.0
    %1887 = vmatpush.xpose.msra.mxu0 0.0
    %1888 = vmatpush.xpose.msra.mxu0 0.0
    %1889 = vmatpush.xpose.msra.mxu0 0.0
    %1890 = vmatpush.xpose.msra.mxu0 0.0
    %1891 = vmatpush.xpose.msra.mxu0 0.0
    %1892 = vmatpush.xpose.msra.mxu0 0.0
    %1893 = vmatpush.xpose.msra.mxu0 0.0
    %1894 = vmatpush.xpose.msra.mxu0 0.0
    %1895 = vmatpush.xpose.msra.mxu0 0.0
    %1896 = vmatpush.xpose.msra.mxu0 %v1879
    %1897 = vmatmul.f32.gmra.mxu0 %v1877
    %v1898 = vpop.f32.mrf.mxu0
    %v1899 = vadd.f32 0.0, %v1898
    %1900 = vdwg.mxu0
    %1901 = vrot.lane.b32.xlu0 %v1196, 88
    %v1902 = vpop.permute.xlu0 %1901
    %1903 = vrot.lane.b32.xlu0 %v1196, 40
    %v1904 = vpop.permute.xlu0 %1903
    %v1905 = vsel %vm260, %v1902, 0
    %v1907 = vsel %vm260, %v1904, 0
    %1909 = vmatpush.xpose.msra.mxu0 0.0
    %1910 = vmatpush.xpose.msra.mxu0 0.0
    %1911 = vmatpush.xpose.msra.mxu0 0.0
    %1912 = vmatpush.xpose.msra.mxu0 0.0
    %1913 = vmatpush.xpose.msra.mxu0 0.0
    %1914 = vmatpush.xpose.msra.mxu0 0.0
    %1915 = vmatpush.xpose.msra.mxu0 0.0
    %1916 = vmatpush.xpose.msra.mxu0 0.0
    %1917 = vmatpush.xpose.msra.mxu0 0.0
    %1918 = vmatpush.xpose.msra.mxu0 0.0
    %1919 = vmatpush.xpose.msra.mxu0 0.0
    %1920 = vmatpush.xpose.msra.mxu0 0.0
    %1921 = vmatpush.xpose.msra.mxu0 0.0
    %1922 = vmatpush.xpose.msra.mxu0 0.0
    %1923 = vmatpush.xpose.msra.mxu0 0.0
    %1924 = vmatpush.xpose.msra.mxu0 %v1907
    %1925 = vmatmul.f32.gmra.mxu0 %v1905
    %v1926 = vpop.f32.mrf.mxu0
    %v1927 = vadd.f32 0.0, %v1926
    %1928 = vdwg.mxu0
    %v1929 = vmul.f32 %v1899, 0.35355338
    %v1930 = vmul.f32 %v1927, 0.35355338
    %v1931 = vsel %vm260, %v1929, -inf
    %1932 = vmax.xlane.f32.xlu0 %v1931
    %v1933 = vpop.xlane.xlu0 %1932
    %v1934 = vsel %vm260, %v1930, -inf
    %1935 = vmax.xlane.f32.xlu0 %v1934
    %v1936 = vpop.xlane.xlu0 %1935
    %v1937 = vsub.f32 %v1929, %v1933
    %v1938 = vsub.f32 %v1930, %v1936
    %v1939 = vmul.f32 %v1937, 1.442695
    %v1940 = vpow.pop %v1939
    %v1941 = vmul.f32 %v1938, 1.442695
    %v1942 = vpow.pop %v1941
    %v1943 = vsel %vm260, %v1940, 0.0
    %1944 = vadd.xlane.f32.xlu0 %v1943
    %v1945 = vpop.xlane.xlu0 %1944
    %v1946 = vsel %vm260, %v1942, 0.0
    %1947 = vadd.xlane.f32.xlu0 %v1946
    %v1948 = vpop.xlane.xlu0 %1947
    %v1949 = vrcp.pop %v1945
    %v1950 = vrcp.pop %v1948
    %v1951 = vmul.f32 %v1940, %v1949
    %v1952 = vmul.f32 %v1942, %v1950
    %1954 = vrot.lane.b32.xlu0 %v1216, 120
    %v1955 = vpop.permute.xlu0 %1954
    %v1958 = vsel %vm260, %v1951, 0
    %1960 = vmatpush.msra.mxu0 0.0
    %1961 = vmatpush.msra.mxu0 0.0
    %1962 = vmatpush.msra.mxu0 0.0
    %1963 = vmatpush.msra.mxu0 0.0
    %1964 = vmatpush.msra.mxu0 0.0
    %1965 = vmatpush.msra.mxu0 0.0
    %1966 = vmatpush.msra.mxu0 0.0
    %1967 = vmatpush.msra.mxu0 0.0
    %1968 = vmatpush.msra.mxu0 0.0
    %1969 = vmatpush.msra.mxu0 0.0
    %1970 = vmatpush.msra.mxu0 0.0
    %1971 = vmatpush.msra.mxu0 0.0
    %1972 = vmatpush.msra.mxu0 0.0
    %1973 = vmatpush.msra.mxu0 0.0
    %1974 = vmatpush.msra.mxu0 0.0
    %1975 = vmatpush.msra.mxu0 %v1955
    %1976 = vmatmul.f32.gmra.mxu0 %v1958
    %v1977 = vpop.f32.mrf.mxu0
    %v1978 = vadd.f32 0.0, %v1977
    %1979 = vdwg.mxu0
    %1981 = vrot.lane.b32.xlu0 %v1219, 120
    %v1982 = vpop.permute.xlu0 %1981
    %v1985 = vsel %vm260, %v1952, 0
    %1987 = vmatpush.msra.mxu0 0.0
    %1988 = vmatpush.msra.mxu0 0.0
    %1989 = vmatpush.msra.mxu0 0.0
    %1990 = vmatpush.msra.mxu0 0.0
    %1991 = vmatpush.msra.mxu0 0.0
    %1992 = vmatpush.msra.mxu0 0.0
    %1993 = vmatpush.msra.mxu0 0.0
    %1994 = vmatpush.msra.mxu0 0.0
    %1995 = vmatpush.msra.mxu0 0.0
    %1996 = vmatpush.msra.mxu0 0.0
    %1997 = vmatpush.msra.mxu0 0.0
    %1998 = vmatpush.msra.mxu0 0.0
    %1999 = vmatpush.msra.mxu0 0.0
    %2000 = vmatpush.msra.mxu0 0.0
    %2001 = vmatpush.msra.mxu0 0.0
    %2002 = vmatpush.msra.mxu0 %v1982
    %2003 = vmatmul.f32.gmra.mxu0 %v1985
    %v2004 = vpop.f32.mrf.mxu0
    %v2005 = vadd.f32 0.0, %v2004
    %2006 = vdwg.mxu0
    %2009 = vrot.lane.b32.xlu0 %v1455, 8
    %v2010 = vpop.permute.xlu0 %2009
    %2011 = vrot.lane.b32.xlu0 %v1481, 8
    %v2012 = vpop.permute.xlu0 %2011
    %2017 = vrot.lane.b32.xlu0 %v1587, 16
    %v2018 = vpop.permute.xlu0 %2017
    %2019 = vrot.lane.b32.xlu0 %v1613, 16
    %v2020 = vpop.permute.xlu0 %2019
    %2025 = vrot.lane.b32.xlu0 %v1719, 24
    %v2026 = vpop.permute.xlu0 %2025
    %2027 = vrot.lane.b32.xlu0 %v1745, 24
    %v2028 = vpop.permute.xlu0 %2027
    %2033 = vrot.lane.b32.xlu0 %v1848, 32
    %v2034 = vpop.permute.xlu0 %2033
    %2035 = vrot.lane.b32.xlu0 %v1871, 32
    %v2036 = vpop.permute.xlu0 %2035
    %2041 = vrot.lane.b32.xlu0 %v1978, 40
    %v2042 = vpop.permute.xlu0 %2041
    %2043 = vrot.lane.b32.xlu0 %v2005, 40
    %v2044 = vpop.permute.xlu0 %2043
    %v2047 = vsel %vm260, %v1323, %v2010
    %v2048 = vsel %vm260, %v1349, %v2012
    %v2049 = vsel %vm1086, %v2047, %v2018
    %v2050 = vsel %vm1086, %v2048, %v2020
    %v2051 = vsel %vm1089, %v2049, %v2026
    %v2052 = vsel %vm1089, %v2050, %v2028
    %v2053 = vsel %vm100, %v2051, %v2034
    %v2054 = vsel %vm100, %v2052, %v2036
    %v2055 = vsel %vm1094, %v2053, %v2042
    %v2056 = vsel %vm1094, %v2054, %v2044
    %v2057 = vadd.f32 %v2055, %v1154
    %v2058 = vadd.f32 %v2056, %v1155
    %v2059 = vsel %vm204, %v2057, 0.0
    %2060 = vadd.xlane.f32.xlu0 %v2059
    %v2061 = vpop.xlane.xlu0 %2060
    %v2062 = vsel %vm204, %v2058, 0.0
    %2063 = vadd.xlane.f32.xlu0 %v2062
    %v2064 = vpop.xlane.xlu0 %2063
    %v2065 = vmul.f32 %v2061, %v1111
    %v2066 = vmul.f32 %v2064, %v1111
    %v2067 = vsub.f32 %v2057, %v2065
    %v2068 = vsub.f32 %v2058, %v2066
    %v2069 = vmul.f32 %v2067, %v2067
    %v2070 = vmul.f32 %v2068, %v2068
    %v2071 = vsel %vm204, %v2069, 0.0
    %2072 = vadd.xlane.f32.xlu0 %v2071
    %v2073 = vpop.xlane.xlu0 %2072
    %v2074 = vsel %vm204, %v2070, 0.0
    %2075 = vadd.xlane.f32.xlu0 %v2074
    %v2076 = vpop.xlane.xlu0 %2075
    %v2077 = vmul.f32 %v2073, %v1111
    %v2078 = vmul.f32 %v2076, %v1111
    %v2079 = vadd.f32 %v2077, 1e-05
    %v2080 = vadd.f32 %v2078, 1e-05
    %v2081 = vrsqrt.pop %v2079
    %v2082 = vmul.f32 %v2081, %v2079
    %v2083 = vmul.f32 %v2082, %v2081
    %v2084 = vmul.f32 0.5, %v2083
    %v2085 = vsub.f32 1.5, %v2084
    %v2086 = vmul.f32 %v2081, %v2085
    %vm2087 = vweird.f32 %v2079
    %vm2088 = vweird.f32 %v2081
    %vm2089 = vmor %vm2087, %vm2088
    %v2090 = vsel %vm2089, %v2081, %v2086
    %v2091 = vrsqrt.pop %v2080
    %v2092 = vmul.f32 %v2091, %v2080
    %v2093 = vmul.f32 %v2092, %v2091
    %v2094 = vmul.f32 0.5, %v2093
    %v2095 = vsub.f32 1.5, %v2094
    %v2096 = vmul.f32 %v2091, %v2095
    %vm2097 = vweird.f32 %v2080
    %vm2098 = vweird.f32 %v2091
    %vm2099 = vmor %vm2097, %vm2098
    %v2100 = vsel %vm2099, %v2091, %v2096
    %v2101 = vmul.f32 %v2067, %v2090
    %v2102 = vmul.f32 %v2068, %v2100
    %v2103 = vmul.f32 %v2101, %v1150
    %v2104 = vmul.f32 %v2102, %v1150
    %v2105 = vadd.f32 %v2103, %v1153
    %v2106 = vadd.f32 %v2104, %v1153
    %v2107 = vperm.slane %v99, 5
    %v2108 = vmul.f32 %v2105, %v2107
    %v2109 = vmul.f32 %v2106, %v2107
    %v2110 = vsel %vm204, %v2108, 0.0
    %2111 = vadd.xlane.f32.xlu0 %v2110
    %v2112 = vpop.xlane.xlu0 %2111
    %v2113 = vsel %vm204, %v2109, 0.0
    %2114 = vadd.xlane.f32.xlu0 %v2113
    %v2115 = vpop.xlane.xlu0 %2114
    %v2116 = vrot.slane %v2112, 4
    %v2117 = vmax.f32 %v2112, %v2116
    %v2118 = vrot.slane %v2117, 2
    %v2119 = vmax.f32 %v2117, %v2118
    %v2120 = vrot.slane %v2119, 1
    %v2121 = vmax.f32 %v2119, %v2120
    %v2122 = vrot.slane %v2115, 4
    %v2123 = vmax.f32 %v2115, %v2122
    %v2124 = vrot.slane %v2123, 2
    %v2125 = vmax.f32 %v2123, %v2124
    %v2126 = vrot.slane %v2125, 1
    %v2127 = vmax.f32 %v2125, %v2126
    %v2128 = vsub.f32 %v2112, %v2121
    %v2129 = vsub.f32 %v2115, %v2127
    %v2130 = vmul.f32 %v2128, 1.442695
    %v2131 = vpow.pop %v2130
    %v2132 = vmul.f32 %v2129, 1.442695
    %v2133 = vpow.pop %v2132
    %v2134 = vrot.slane %v2131, 4
    %v2135 = vadd.f32 %v2131, %v2134
    %v2136 = vrot.slane %v2135, 2
    %v2137 = vadd.f32 %v2135, %v2136
    %v2138 = vrot.slane %v2137, 1
    %v2139 = vadd.f32 %v2137, %v2138
    %v2140 = vrot.slane %v2133, 4
    %v2141 = vadd.f32 %v2133, %v2140
    %v2142 = vrot.slane %v2141, 2
    %v2143 = vadd.f32 %v2141, %v2142
    %v2144 = vrot.slane %v2143, 1
    %v2145 = vadd.f32 %v2143, %v2144
    %v2146 = vrcp.pop %v2139
    %v2147 = vrcp.pop %v2145
    %v2148 = vmul.f32 %v2131, %v2146
    %v2149 = vmul.f32 %v2133, %v2147
    %v2150 = vmul.f32 %v2148, %v2105
    %v2151 = vmul.f32 %v2149, %v2106
    %v2152 = vsel %vm204, %v2150, 0.0
    %v2153 = vrot.slane %v2152, 4
    %v2154 = vadd.f32 %v2152, %v2153
    %v2155 = vrot.slane %v2154, 2
    %v2156 = vadd.f32 %v2154, %v2155
    %v2157 = vrot.slane %v2156, 1
    %v2158 = vadd.f32 %v2156, %v2157
    %v2159 = vsel %vm204, %v2151, 0.0
    %v2160 = vrot.slane %v2159, 4
    %v2161 = vadd.f32 %v2159, %v2160
    %v2162 = vrot.slane %v2161, 2
    %v2163 = vadd.f32 %v2161, %v2162
    %v2164 = vrot.slane %v2163, 1
    %v2165 = vadd.f32 %v2163, %v2164
    %v2166 = vld [vmem:[#allocation10] sm:$0xff]
    %v2167 = vld [vmem:[#allocation10 + $0x8] sm:$0xff]
    %v2168 = vld [vmem:[#allocation10 + $0x10] sm:$0xff]
    %v2169 = vld [vmem:[#allocation10 + $0x18] sm:$0xff]
    %v2170 = vld [vmem:[#allocation10 + $0x20] sm:$0xff]
    %v2171 = vld [vmem:[#allocation10 + $0x28] sm:$0xff]
    %v2172 = vperm.slane %v99, 6
    %vm2175 = vcmask 1041409
    %v2176 = vsel %vm2175, %v2165, %v2158
    %v2177 = vsel %vm204, %v2176, 0
    %2179 = vmatpush.msra.mxu0 0.0
    %2180 = vmatpush.msra.mxu0 0.0
    %2181 = vmatpush.msra.mxu0 0.0
    %2182 = vmatpush.msra.mxu0 0.0
    %2183 = vmatpush.msra.mxu0 0.0
    %2184 = vmatpush.msra.mxu0 0.0
    %2185 = vmatpush.msra.mxu0 0.0
    %2186 = vmatpush.msra.mxu0 0.0
    %2187 = vmatpush.msra.mxu0 0.0
    %2188 = vmatpush.msra.mxu0 0.0
    %2189 = vmatpush.msra.mxu0 %v2171
    %2190 = vmatpush.msra.mxu0 %v2170
    %2191 = vmatpush.msra.mxu0 %v2169
    %2192 = vmatpush.msra.mxu0 %v2168
    %2193 = vmatpush.msra.mxu0 %v2167
    %2194 = vmatpush.msra.mxu0 %v2166
    %2195 = vmatmul.f32.gmra.mxu0 %v2177
    %v2196 = vpop.f32.mrf.mxu0
    %v2197 = vadd.f32 %v2172, %v2196
    %2198 = vdwg.mxu0
    %2199 = vst [vmem:[#allocation11] sm:$0x3] %v2197
    // Predicated region
    $region42: #{mhsal_forward.1} parent=1 // pred_check
      _
    $region43: #{mhsal_forward.1} parent=1 // pred_check_branch
      %2201 = sbr.rel (0) target = $region45
    $region44: #{mhsal_forward.1} parent=1 // pred_region
      %2203 = vsyncadd [#allocation4], 0
      %s2205 = sshll.u32 [#allocation11], 4
      %s2206 = int_to_ptr.vmem [resolvable:$true] %s2205
      %s2207 = sshll.u32 %s5, 4
      %s2208 = int_to_ptr.hbm [resolvable:$true] %s2207
      %2210 = dma.vmem_to_hbm [thread:$0]  %s2206, 32, %s2208, [#allocation4]
    $region45: #{mhsal_forward.1} parent=1 // pred_fallthru
      _
    // Predicated region
    $region46: #{mhsal_forward.1} parent=1 // pred_check
      _
    $region47: #{mhsal_forward.1} parent=1 // pred_check_branch
      %2212 = sbr.rel (0) target = $region49
    $region48: #{mhsal_forward.1} parent=1 // pred_region
      %2214 = dma.done [#allocation4], 32
    $region49: #{mhsal_forward.1} parent=1 // pred_fallthru
      _
    %2215 = vsyncpa [#allocation3], 1
    %2216 = vsyncpa [#allocation6], 1
    %2217 = vsyncpa [#allocation9], 1
    %2218 = vsyncpa [#allocation4], 1

</llo_original>
